<compile_context>
chip_gen: v6e
topology: v6e:2x2x1
jax: 0.10.0
libtpu: 0.0.40
codegen_flags: <defaults>
</compile_context>

<pallas_src>
import jax
import jax.numpy as jnp
from jax.experimental import pallas as pl
from jax.experimental.pallas import tpu as pltpu


_J_MAX = 8              # selected blocks fused per grid step (amortizes ~0.35 us/step)
_PIPELINE_BUFFERS = 3   # deeper buffering for the tiny gathered tiles


def _choose_tiling(num_sel, j_max=_J_MAX):
    """Pick J (blocks fused per grid step) and num_sel padded to a multiple of J."""
    if num_sel <= j_max:
        return num_sel, num_sel
    padded = ((num_sel + j_max - 1) // j_max) * j_max
    return j_max, padded


# ---- index maps (scalar-prefetch refs arrive positionally after grid ids) ----
def _coarse_map(i, J):
    return lambda b, g, bank_tbl, blk_tbl: (b, blk_tbl[b, g * J + i], 0, 0)


def _bank_map(i, J):
    return lambda b, g, bank_tbl, blk_tbl: (b, bank_tbl[b, g * J + i], 0, 0)


def _pos_map(b, g, bank_tbl, blk_tbl):
    return (b, g, 0, 0)


# ---------------------------------------------------------------------------
# Pallas kernel: for each of the J blocks of this grid step,
#   out[b, g*J+i] = (coarse[b, blk_idx[b, g*J+i]] - bank[b, bank_idx[b, g*J+i]]) [* mask]
# ---------------------------------------------------------------------------
def _make_finer_kernel(J, with_mask):
    def kernel(*refs):
        # refs = (bank_idx_smem, blk_idx_smem,
        #         coarse_0..J-1 : (1,1,1,dim),
        #         bank_0..J-1   : (1,1,block_size,dim),
        #         [mask         : (1,J,block_size,1)],
        #         out           : (1,J,block_size,dim))
        coarse_refs = refs[2:2 + J]
        bank_refs = refs[2 + J:2 + 2 * J]
        mask_ref = refs[2 + 2 * J] if with_mask else None
        out_ref = refs[-1]
        for i in range(J):                       # static unroll
            c = coarse_refs[i][0, 0, :, :]       # (1, dim)        lane-dense
            d = bank_refs[i][0, 0, :, :]         # (block_size, dim)
            r = c - d                            # broadcast subtract
            if with_mask:
                r = r * mask_ref[0, i, :, :]     # (block_size, 1) lane-broadcast
            out_ref[0, i, :, :] = r.astype(out_ref.dtype)
    return kernel


def finer_difference(coarse_states, bank, blk_indices, bank_indices, mask=None):
    """Fused gather / subtract / (optional) mask.

    coarse_states: (B, num_blocks, dim)
    bank         : (B, bank_size, block_size, dim)
    blk_indices  : (B, num_sel) int32 into num_blocks axis of coarse_states
    bank_indices : (B, num_sel) int32 into bank_size axis of bank
    mask         : optional (B, num_sel * block_size) per-token float mask
    returns      : (B, num_sel * block_size, dim)
    """
    B, num_blocks, dim = coarse_states.shape
    _, bank_size, block_size, _ = bank.shape
    num_sel = blk_indices.shape[1]
    J, num_sel_pad = _choose_tiling(num_sel)
    num_groups = num_sel_pad // J
    pad = num_sel_pad - num_sel
    with_mask = mask is not None

    blk_idx = blk_indices.astype(jnp.int32)
    bank_idx = bank_indices.astype(jnp.int32)
    if pad:
        blk_idx = jnp.pad(blk_idx, ((0, 0), (0, pad)))     # pad with valid index 0
        bank_idx = jnp.pad(bank_idx, ((0, 0), (0, pad)))

    coarse4 = coarse_states[:, :, None, :]                  # (B, NB, 1, dim)
    operands = [bank_idx, blk_idx] + [coarse4] * J + [bank] * J
    if with_mask:
        mask4 = mask.reshape(B, num_sel, block_size, 1).astype(coarse_states.dtype)
        if pad:
            mask4 = jnp.pad(mask4, ((0, 0), (0, pad), (0, 0), (0, 0)))
        operands.append(mask4)

    def build(buffers):
        extra = {} if buffers is None else dict(pipeline_mode=pl.Buffered(buffers))
        in_specs = (
            [pl.BlockSpec((1, 1, 1, dim), _coarse_map(i, J), **extra) for i in range(J)]
            + [pl.BlockSpec((1, 1, block_size, dim), _bank_map(i, J), **extra)
               for i in range(J)]
        )
        if with_mask:
            in_specs.append(pl.BlockSpec((1, J, block_size, 1), _pos_map))
        grid_spec = pltpu.PrefetchScalarGridSpec(
            num_scalar_prefetch=2,
            grid=(B, num_groups),
            in_specs=in_specs,
            out_specs=pl.BlockSpec((1, J, block_size, dim), _pos_map),
        )
        return pl.pallas_call(
            _make_finer_kernel(J, with_mask),
            out_shape=jax.ShapeDtypeStruct((B, num_sel_pad, block_size, dim),
                                           coarse_states.dtype),
            grid_spec=grid_spec,
            compiler_params=pltpu.CompilerParams(
                dimension_semantics=("parallel", "parallel")),
        )

    out = None
    last_err = None
    for buffers in (_PIPELINE_BUFFERS, None):   # fall back to default double-buffering
        try:
            out = build(buffers)(*operands)
            break
        except Exception as e:                  # pragma: no cover
            last_err = e
    if out is None:
        raise last_err

    if pad:
        out = out[:, :num_sel]
    return out.reshape(B, num_sel * block_size, dim)


# ---------------------------------------------------------------------------
# cache_select (version 0): the bank gather itself happens inside the Pallas
# kernel via data-dependent BlockSpecs; here we only resolve indice_table.
# ---------------------------------------------------------------------------
def _cache_bank_indices(cache, select_indices):
    assert cache['version'] == 0
    return jnp.take_along_axis(cache['indice_table'],
                               select_indices.astype(jnp.int32), axis=1)


# ---------------------------------------------------------------------------
# Finer.forward
# ---------------------------------------------------------------------------
def finer_forward(mixed_states, block_size):
    mixed_states = dict(mixed_states)  # emulate in-place dict mutation on a copy

    if 'fine_block_indices' in mixed_states and 'coarse_block_indices' in mixed_states:
        # NOTE: the reference implementation calls ipdb.set_trace() here (debugger); skipped.
        fine_token_mask = mixed_states['fine_token_mask']
        coarse_token_states = mixed_states.pop('coarse_token_states')
        coarse_token_mask = mixed_states['coarse_token_mask']
        fine_block_indices = mixed_states['fine_block_indices'].astype(jnp.int32)
        fine_block_scores = mixed_states.pop('fine_block_scores')
        coarse_block_indices = mixed_states['coarse_block_indices'].astype(jnp.int32)
        coarse_block_scores = mixed_states.pop('coarse_block_scores')

        B, num_blocks, dim = coarse_token_states.shape
        num_fine = fine_block_indices.shape[1]

        partial_coarse_token_scores = coarse_block_scores
        partial_coarse_token_states = jnp.take_along_axis(
            coarse_token_states, coarse_block_indices[:, :, None], axis=1)
        partial_coarse_token_mask = jnp.take_along_axis(
            coarse_token_mask, coarse_block_indices, axis=1)
        partial_fine_token_scores = jnp.repeat(
            fine_block_scores[:, :, None], block_size, axis=2
        ).reshape(B, num_fine * block_size)

        cache = mixed_states['difference_cache']
        bank_indices = _cache_bank_indices(cache, fine_block_indices)
        # No-mask kernel variant: branch 1 applies no per-token mask to the states.
        partial_fine_token_states = finer_difference(
            coarse_token_states, cache['bank'],
            fine_block_indices, bank_indices, mask=None)

        fine_token_mask_r = fine_token_mask.reshape(B, num_blocks, block_size)
        partial_fine_token_mask = jnp.take_along_axis(
            fine_token_mask_r, fine_block_indices[:, :, None], axis=1
        ).reshape(B, num_fine * block_size)

        mixed_states['partial_fine_token_states'] = partial_fine_token_states
        mixed_states['partial_fine_token_mask'] = partial_fine_token_mask
        mixed_states['partial_fine_token_scores'] = partial_fine_token_scores
        mixed_states['partial_fine_token_num_dups'] = jnp.ones_like(partial_fine_token_scores)
        mixed_states['partial_coarse_token_states'] = partial_coarse_token_states
        mixed_states['partial_coarse_token_mask'] = partial_coarse_token_mask
        mixed_states['partial_coarse_token_scores'] = partial_coarse_token_scores
        mixed_states['partial_coarse_token_num_dups'] = (
            block_size * jnp.ones_like(partial_coarse_token_scores))

        if 'coarse_token_positions' in mixed_states and 'fine_token_positions' in mixed_states:
            coarse_token_positions = mixed_states['coarse_token_positions']
            fine_token_positions = mixed_states['fine_token_positions']
            mixed_states['partial_coarse_token_positions'] = jnp.take_along_axis(
                coarse_token_positions, coarse_block_indices, axis=1)
            ftp = fine_token_positions.reshape(B, num_blocks, block_size)
            mixed_states['partial_fine_token_positions'] = jnp.take_along_axis(
                ftp, fine_block_indices[:, :, None], axis=1
            ).reshape(B, num_fine * block_size)

    elif 'coarse_token_states' in mixed_states and 'coarse_token_mask' in mixed_states:
        coarse_token_states = mixed_states.pop('coarse_token_states')
        _coarse_token_mask = mixed_states.pop('coarse_token_mask')
        B, num_blocks, dim = coarse_token_states.shape
        fine_block_indices = jnp.broadcast_to(
            jnp.arange(num_blocks, dtype=jnp.int32)[None, :], (B, num_blocks))
        cache = mixed_states.pop('difference_cache')
        bank_indices = _cache_bank_indices(cache, fine_block_indices)
        fine_token_mask = mixed_states['fine_token_mask'].astype(coarse_token_states.dtype)
        mixed_states['fine_token_states'] = finer_difference(
            coarse_token_states, cache['bank'],
            fine_block_indices, bank_indices, mask=fine_token_mask)
    else:
        raise Exception()

    return mixed_states


# ---------------------------------------------------------------------------
# main
# ---------------------------------------------------------------------------
if __name__ == "__main__":
    B, num_blocks, block_size, dim, bank_size = 2, 8, 8, 128, 6

    key = jax.random.PRNGKey(0)
    k0, k1, k2, k3, k4, k5, k6, k7, k8 = jax.random.split(key, 9)

    coarse_token_states = jax.random.normal(k0, (B, num_blocks, dim), jnp.float32)
    coarse_token_mask = (jax.random.uniform(k1, (B, num_blocks)) > 0.2).astype(jnp.float32)
    fine_token_mask = (jax.random.uniform(k2, (B, num_blocks * block_size)) > 0.2
                       ).astype(jnp.float32)
    indice_table = jax.random.randint(k3, (B, num_blocks), 0, bank_size, jnp.int32)
    bank = jax.random.normal(k4, (B, bank_size, block_size, dim), jnp.float32)
    difference_cache = {'version': 0, 'indice_table': indice_table, 'bank': bank}

    batch_idx = jnp.arange(B)[:, None]

    # ----- branch 2 ('coarse_token_states' + 'coarse_token_mask' only) -----
    mixed_states_2 = {
        'coarse_token_states': coarse_token_states,
        'coarse_token_mask': coarse_token_mask,
        'fine_token_mask': fine_token_mask,
        'difference_cache': difference_cache,
    }
    out2 = finer_forward(mixed_states_2, block_size)
    fine_token_states = jax.block_until_ready(out2['fine_token_states'])

    diff_ref = bank[batch_idx, indice_table]                              # (B, NB, BS, D)
    ref2 = ((coarse_token_states[:, :, None, :] - diff_ref)
            .reshape(B, num_blocks * block_size, dim)
            * fine_token_mask[:, :, None])
    assert jnp.allclose(fine_token_states, ref2, atol=1e-5, rtol=1e-5)

    # ----- branch 1 ('fine_block_indices' + 'coarse_block_indices') -----
    num_fine, num_coarse = 3, 4
    fine_block_indices = jax.random.randint(k5, (B, num_fine), 0, num_blocks, jnp.int32)
    coarse_block_indices = jax.random.randint(k6, (B, num_coarse), 0, num_blocks, jnp.int32)
    fine_block_scores = jax.random.normal(k7, (B, num_fine), jnp.float32)
    coarse_block_scores = jax.random.normal(k7, (B, num_coarse), jnp.float32)
    mixed_states_1 = {
        'coarse_token_states': coarse_token_states,
        'coarse_token_mask': coarse_token_mask,
        'fine_token_mask': fine_token_mask,
        'fine_block_indices': fine_block_indices,
        'coarse_block_indices': coarse_block_indices,
        'fine_block_scores': fine_block_scores,
        'coarse_block_scores': coarse_block_scores,
        'difference_cache': difference_cache,
        'coarse_token_positions': jnp.broadcast_to(
            jnp.arange(num_blocks, dtype=jnp.float32)[None, :], (B, num_blocks)),
        'fine_token_positions': jnp.broadcast_to(
            jnp.arange(num_blocks * block_size, dtype=jnp.float32)[None, :],
            (B, num_blocks * block_size)),
    }
    out1 = finer_forward(mixed_states_1, block_size)
    partial_fine = jax.block_until_ready(out1['partial_fine_token_states'])

    to_fine = coarse_token_states[batch_idx, fine_block_indices]
    diff1 = bank[batch_idx, indice_table[batch_idx, fine_block_indices]]
    ref1 = (to_fine[:, :, None, :] - diff1).reshape(B, num_fine * block_size, dim)
    assert jnp.allclose(partial_fine, ref1, atol=1e-5, rtol=1e-5)

    # ----- extra check: multi-group grid with index padding (num_sel=11 -> J=8, pad=5) -----
    num_sel_x = 11
    blk_x = jax.random.randint(k8, (B, num_sel_x), 0, num_blocks, jnp.int32)
    bank_x = jnp.take_along_axis(indice_table, blk_x, axis=1)
    out_x = jax.block_until_ready(
        finer_difference(coarse_token_states, bank, blk_x, bank_x, mask=None))
    ref_x = (coarse_token_states[batch_idx, blk_x][:, :, None, :]
             - bank[batch_idx, bank_x]).reshape(B, num_sel_x * block_size, dim)
    assert jnp.allclose(out_x, ref_x, atol=1e-5, rtol=1e-5)

    print("KERNEL_OK")
</pallas_src>

<mosaic_0001>
module attributes {stable_mosaic.version = 11 : i64} {
  func.func @kernel(%arg0: i32, %arg1: i32, %arg2: memref<2x8xi32, #tpu.memory_space<smem>>, %arg3: memref<2x8xi32, #tpu.memory_space<smem>>, %arg4: memref<1x1x1x128xf32, #tpu.memory_space<vmem>>, %arg5: memref<1x1x1x128xf32, #tpu.memory_space<vmem>>, %arg6: memref<1x1x1x128xf32, #tpu.memory_space<vmem>>, %arg7: memref<1x1x1x128xf32, #tpu.memory_space<vmem>>, %arg8: memref<1x1x1x128xf32, #tpu.memory_space<vmem>>, %arg9: memref<1x1x1x128xf32, #tpu.memory_space<vmem>>, %arg10: memref<1x1x1x128xf32, #tpu.memory_space<vmem>>, %arg11: memref<1x1x1x128xf32, #tpu.memory_space<vmem>>, %arg12: memref<1x1x8x128xf32, #tpu.memory_space<vmem>>, %arg13: memref<1x1x8x128xf32, #tpu.memory_space<vmem>>, %arg14: memref<1x1x8x128xf32, #tpu.memory_space<vmem>>, %arg15: memref<1x1x8x128xf32, #tpu.memory_space<vmem>>, %arg16: memref<1x1x8x128xf32, #tpu.memory_space<vmem>>, %arg17: memref<1x1x8x128xf32, #tpu.memory_space<vmem>>, %arg18: memref<1x1x8x128xf32, #tpu.memory_space<vmem>>, %arg19: memref<1x1x8x128xf32, #tpu.memory_space<vmem>>, %arg20: memref<1x8x8x1xf32, #tpu.memory_space<vmem>>, %arg21: memref<1x8x8x128xf32, #tpu.memory_space<vmem>>) attributes {dimension_semantics = [#tpu.dimension_semantics<parallel>, #tpu.dimension_semantics<parallel>], iteration_bounds = array<i64: 2, 1>, scalar_prefetch = 2 : i64, scratch_operands = 0 : i64, tpu.core_type = #tpu.core_type<tc>, window_params = [{transform_indices = @transform_0, window_bounds = array<i64: 1, 1, 1, 128>}, {transform_indices = @transform_1, window_bounds = array<i64: 1, 1, 1, 128>}, {transform_indices = @transform_2, window_bounds = array<i64: 1, 1, 1, 128>}, {transform_indices = @transform_3, window_bounds = array<i64: 1, 1, 1, 128>}, {transform_indices = @transform_4, window_bounds = array<i64: 1, 1, 1, 128>}, {transform_indices = @transform_5, window_bounds = array<i64: 1, 1, 1, 128>}, {transform_indices = @transform_6, window_bounds = array<i64: 1, 1, 1, 128>}, {transform_indices = @transform_7, window_bounds = array<i64: 1, 1, 1, 128>}, {transform_indices = @transform_8, window_bounds = array<i64: 1, 1, 8, 128>}, {transform_indices = @transform_9, window_bounds = array<i64: 1, 1, 8, 128>}, {transform_indices = @transform_10, window_bounds = array<i64: 1, 1, 8, 128>}, {transform_indices = @transform_11, window_bounds = array<i64: 1, 1, 8, 128>}, {transform_indices = @transform_12, window_bounds = array<i64: 1, 1, 8, 128>}, {transform_indices = @transform_13, window_bounds = array<i64: 1, 1, 8, 128>}, {transform_indices = @transform_14, window_bounds = array<i64: 1, 1, 8, 128>}, {transform_indices = @transform_15, window_bounds = array<i64: 1, 1, 8, 128>}, {transform_indices = @transform_16, window_bounds = array<i64: 1, 8, 8, 1>}, {transform_indices = @transform_17, window_bounds = array<i64: 1, 8, 8, 128>}]} {
    %c0 = arith.constant 0 : index
    %c0_0 = arith.constant 0 : index
    %c0_1 = arith.constant 0 : index
    %c0_2 = arith.constant 0 : index
    %0 = vector.load %arg4[%c0, %c0_0, %c0_1, %c0_2] : memref<1x1x1x128xf32, #tpu.memory_space<vmem>>, vector<1x1x1x128xf32>
    %1 = vector.shape_cast %0 : vector<1x1x1x128xf32> to vector<1x128xf32>
    %c0_3 = arith.constant 0 : index
    %c0_4 = arith.constant 0 : index
    %c0_5 = arith.constant 0 : index
    %c0_6 = arith.constant 0 : index
    %2 = vector.load %arg12[%c0_3, %c0_4, %c0_5, %c0_6] : memref<1x1x8x128xf32, #tpu.memory_space<vmem>>, vector<1x1x8x128xf32>
    %3 = vector.shape_cast %2 : vector<1x1x8x128xf32> to vector<8x128xf32>
    %4 = vector.broadcast %1 : vector<1x128xf32> to vector<8x128xf32>
    %5 = arith.subf %4, %3 : vector<8x128xf32>
    %c0_7 = arith.constant 0 : index
    %c0_8 = arith.constant 0 : index
    %c0_9 = arith.constant 0 : index
    %c0_10 = arith.constant 0 : index
    %6 = vector.load %arg20[%c0_7, %c0_8, %c0_9, %c0_10] : memref<1x8x8x1xf32, #tpu.memory_space<vmem>>, vector<1x1x8x1xf32>
    %7 = vector.shape_cast %6 : vector<1x1x8x1xf32> to vector<8x1xf32>
    %8 = vector.broadcast %7 : vector<8x1xf32> to vector<8x128xf32>
    %9 = arith.mulf %5, %8 : vector<8x128xf32>
    %c0_11 = arith.constant 0 : index
    %c0_12 = arith.constant 0 : index
    %c0_13 = arith.constant 0 : index
    %c0_14 = arith.constant 0 : index
    %10 = vector.load %arg21[%c0_11, %c0_12, %c0_13, %c0_14] : memref<1x8x8x128xf32, #tpu.memory_space<vmem>>, vector<1x1x8x128xf32>
    %11 = vector.shape_cast %10 : vector<1x1x8x128xf32> to vector<8x128xf32>
    %12 = vector.shape_cast %9 : vector<8x128xf32> to vector<1x1x8x128xf32>
    tpu.vector_store %arg21[%c0_11, %c0_12, %c0_13, %c0_14], %12 {strides = array<i32>} : memref<1x8x8x128xf32, #tpu.memory_space<vmem>>, vector<1x1x8x128xf32>,
    %c0_15 = arith.constant 0 : index
    %c0_16 = arith.constant 0 : index
    %c0_17 = arith.constant 0 : index
    %c0_18 = arith.constant 0 : index
    %13 = vector.load %arg5[%c0_15, %c0_16, %c0_17, %c0_18] : memref<1x1x1x128xf32, #tpu.memory_space<vmem>>, vector<1x1x1x128xf32>
    %14 = vector.shape_cast %13 : vector<1x1x1x128xf32> to vector<1x128xf32>
    %c0_19 = arith.constant 0 : index
    %c0_20 = arith.constant 0 : index
    %c0_21 = arith.constant 0 : index
    %c0_22 = arith.constant 0 : index
    %15 = vector.load %arg13[%c0_19, %c0_20, %c0_21, %c0_22] : memref<1x1x8x128xf32, #tpu.memory_space<vmem>>, vector<1x1x8x128xf32>
    %16 = vector.shape_cast %15 : vector<1x1x8x128xf32> to vector<8x128xf32>
    %17 = vector.broadcast %14 : vector<1x128xf32> to vector<8x128xf32>
    %18 = arith.subf %17, %16 : vector<8x128xf32>
    %c0_23 = arith.constant 0 : index
    %c1 = arith.constant 1 : index
    %c0_24 = arith.constant 0 : index
    %c0_25 = arith.constant 0 : index
    %19 = vector.load %arg20[%c0_23, %c1, %c0_24, %c0_25] : memref<1x8x8x1xf32, #tpu.memory_space<vmem>>, vector<1x1x8x1xf32>
    %20 = vector.shape_cast %19 : vector<1x1x8x1xf32> to vector<8x1xf32>
    %21 = vector.broadcast %20 : vector<8x1xf32> to vector<8x128xf32>
    %22 = arith.mulf %18, %21 : vector<8x128xf32>
    %c0_26 = arith.constant 0 : index
    %c1_27 = arith.constant 1 : index
    %c0_28 = arith.constant 0 : index
    %c0_29 = arith.constant 0 : index
    %23 = vector.load %arg21[%c0_26, %c1_27, %c0_28, %c0_29] : memref<1x8x8x128xf32, #tpu.memory_space<vmem>>, vector<1x1x8x128xf32>
    %24 = vector.shape_cast %23 : vector<1x1x8x128xf32> to vector<8x128xf32>
    %25 = vector.shape_cast %22 : vector<8x128xf32> to vector<1x1x8x128xf32>
    tpu.vector_store %arg21[%c0_26, %c1_27, %c0_28, %c0_29], %25 {strides = array<i32>} : memref<1x8x8x128xf32, #tpu.memory_space<vmem>>, vector<1x1x8x128xf32>,
    %c0_30 = arith.constant 0 : index
    %c0_31 = arith.constant 0 : index
    %c0_32 = arith.constant 0 : index
    %c0_33 = arith.constant 0 : index
    %26 = vector.load %arg6[%c0_30, %c0_31, %c0_32, %c0_33] : memref<1x1x1x128xf32, #tpu.memory_space<vmem>>, vector<1x1x1x128xf32>
    %27 = vector.shape_cast %26 : vector<1x1x1x128xf32> to vector<1x128xf32>
    %c0_34 = arith.constant 0 : index
    %c0_35 = arith.constant 0 : index
    %c0_36 = arith.constant 0 : index
    %c0_37 = arith.constant 0 : index
    %28 = vector.load %arg14[%c0_34, %c0_35, %c0_36, %c0_37] : memref<1x1x8x128xf32, #tpu.memory_space<vmem>>, vector<1x1x8x128xf32>
    %29 = vector.shape_cast %28 : vector<1x1x8x128xf32> to vector<8x128xf32>
    %30 = vector.broadcast %27 : vector<1x128xf32> to vector<8x128xf32>
    %31 = arith.subf %30, %29 : vector<8x128xf32>
    %c0_38 = arith.constant 0 : index
    %c2 = arith.constant 2 : index
    %c0_39 = arith.constant 0 : index
    %c0_40 = arith.constant 0 : index
    %32 = vector.load %arg20[%c0_38, %c2, %c0_39, %c0_40] : memref<1x8x8x1xf32, #tpu.memory_space<vmem>>, vector<1x1x8x1xf32>
    %33 = vector.shape_cast %32 : vector<1x1x8x1xf32> to vector<8x1xf32>
    %34 = vector.broadcast %33 : vector<8x1xf32> to vector<8x128xf32>
    %35 = arith.mulf %31, %34 : vector<8x128xf32>
    %c0_41 = arith.constant 0 : index
    %c2_42 = arith.constant 2 : index
    %c0_43 = arith.constant 0 : index
    %c0_44 = arith.constant 0 : index
    %36 = vector.load %arg21[%c0_41, %c2_42, %c0_43, %c0_44] : memref<1x8x8x128xf32, #tpu.memory_space<vmem>>, vector<1x1x8x128xf32>
    %37 = vector.shape_cast %36 : vector<1x1x8x128xf32> to vector<8x128xf32>
    %38 = vector.shape_cast %35 : vector<8x128xf32> to vector<1x1x8x128xf32>
    tpu.vector_store %arg21[%c0_41, %c2_42, %c0_43, %c0_44], %38 {strides = array<i32>} : memref<1x8x8x128xf32, #tpu.memory_space<vmem>>, vector<1x1x8x128xf32>,
    %c0_45 = arith.constant 0 : index
    %c0_46 = arith.constant 0 : index
    %c0_47 = arith.constant 0 : index
    %c0_48 = arith.constant 0 : index
    %39 = vector.load %arg7[%c0_45, %c0_46, %c0_47, %c0_48] : memref<1x1x1x128xf32, #tpu.memory_space<vmem>>, vector<1x1x1x128xf32>
    %40 = vector.shape_cast %39 : vector<1x1x1x128xf32> to vector<1x128xf32>
    %c0_49 = arith.constant 0 : index
    %c0_50 = arith.constant 0 : index
    %c0_51 = arith.constant 0 : index
    %c0_52 = arith.constant 0 : index
    %41 = vector.load %arg15[%c0_49, %c0_50, %c0_51, %c0_52] : memref<1x1x8x128xf32, #tpu.memory_space<vmem>>, vector<1x1x8x128xf32>
    %42 = vector.shape_cast %41 : vector<1x1x8x128xf32> to vector<8x128xf32>
    %43 = vector.broadcast %40 : vector<1x128xf32> to vector<8x128xf32>
    %44 = arith.subf %43, %42 : vector<8x128xf32>
    %c0_53 = arith.constant 0 : index
    %c3 = arith.constant 3 : index
    %c0_54 = arith.constant 0 : index
    %c0_55 = arith.constant 0 : index
    %45 = vector.load %arg20[%c0_53, %c3, %c0_54, %c0_55] : memref<1x8x8x1xf32, #tpu.memory_space<vmem>>, vector<1x1x8x1xf32>
    %46 = vector.shape_cast %45 : vector<1x1x8x1xf32> to vector<8x1xf32>
    %47 = vector.broadcast %46 : vector<8x1xf32> to vector<8x128xf32>
    %48 = arith.mulf %44, %47 : vector<8x128xf32>
    %c0_56 = arith.constant 0 : index
    %c3_57 = arith.constant 3 : index
    %c0_58 = arith.constant 0 : index
    %c0_59 = arith.constant 0 : index
    %49 = vector.load %arg21[%c0_56, %c3_57, %c0_58, %c0_59] : memref<1x8x8x128xf32, #tpu.memory_space<vmem>>, vector<1x1x8x128xf32>
    %50 = vector.shape_cast %49 : vector<1x1x8x128xf32> to vector<8x128xf32>
    %51 = vector.shape_cast %48 : vector<8x128xf32> to vector<1x1x8x128xf32>
    tpu.vector_store %arg21[%c0_56, %c3_57, %c0_58, %c0_59], %51 {strides = array<i32>} : memref<1x8x8x128xf32, #tpu.memory_space<vmem>>, vector<1x1x8x128xf32>,
    %c0_60 = arith.constant 0 : index
    %c0_61 = arith.constant 0 : index
    %c0_62 = arith.constant 0 : index
    %c0_63 = arith.constant 0 : index
    %52 = vector.load %arg8[%c0_60, %c0_61, %c0_62, %c0_63] : memref<1x1x1x128xf32, #tpu.memory_space<vmem>>, vector<1x1x1x128xf32>
    %53 = vector.shape_cast %52 : vector<1x1x1x128xf32> to vector<1x128xf32>
    %c0_64 = arith.constant 0 : index
    %c0_65 = arith.constant 0 : index
    %c0_66 = arith.constant 0 : index
    %c0_67 = arith.constant 0 : index
    %54 = vector.load %arg16[%c0_64, %c0_65, %c0_66, %c0_67] : memref<1x1x8x128xf32, #tpu.memory_space<vmem>>, vector<1x1x8x128xf32>
    %55 = vector.shape_cast %54 : vector<1x1x8x128xf32> to vector<8x128xf32>
    %56 = vector.broadcast %53 : vector<1x128xf32> to vector<8x128xf32>
    %57 = arith.subf %56, %55 : vector<8x128xf32>
    %c0_68 = arith.constant 0 : index
    %c4 = arith.constant 4 : index
    %c0_69 = arith.constant 0 : index
    %c0_70 = arith.constant 0 : index
    %58 = vector.load %arg20[%c0_68, %c4, %c0_69, %c0_70] : memref<1x8x8x1xf32, #tpu.memory_space<vmem>>, vector<1x1x8x1xf32>
    %59 = vector.shape_cast %58 : vector<1x1x8x1xf32> to vector<8x1xf32>
    %60 = vector.broadcast %59 : vector<8x1xf32> to vector<8x128xf32>
    %61 = arith.mulf %57, %60 : vector<8x128xf32>
    %c0_71 = arith.constant 0 : index
    %c4_72 = arith.constant 4 : index
    %c0_73 = arith.constant 0 : index
    %c0_74 = arith.constant 0 : index
    %62 = vector.load %arg21[%c0_71, %c4_72, %c0_73, %c0_74] : memref<1x8x8x128xf32, #tpu.memory_space<vmem>>, vector<1x1x8x128xf32>
    %63 = vector.shape_cast %62 : vector<1x1x8x128xf32> to vector<8x128xf32>
    %64 = vector.shape_cast %61 : vector<8x128xf32> to vector<1x1x8x128xf32>
    tpu.vector_store %arg21[%c0_71, %c4_72, %c0_73, %c0_74], %64 {strides = array<i32>} : memref<1x8x8x128xf32, #tpu.memory_space<vmem>>, vector<1x1x8x128xf32>,
    %c0_75 = arith.constant 0 : index
    %c0_76 = arith.constant 0 : index
    %c0_77 = arith.constant 0 : index
    %c0_78 = arith.constant 0 : index
    %65 = vector.load %arg9[%c0_75, %c0_76, %c0_77, %c0_78] : memref<1x1x1x128xf32, #tpu.memory_space<vmem>>, vector<1x1x1x128xf32>
    %66 = vector.shape_cast %65 : vector<1x1x1x128xf32> to vector<1x128xf32>
    %c0_79 = arith.constant 0 : index
    %c0_80 = arith.constant 0 : index
    %c0_81 = arith.constant 0 : index
    %c0_82 = arith.constant 0 : index
    %67 = vector.load %arg17[%c0_79, %c0_80, %c0_81, %c0_82] : memref<1x1x8x128xf32, #tpu.memory_space<vmem>>, vector<1x1x8x128xf32>
    %68 = vector.shape_cast %67 : vector<1x1x8x128xf32> to vector<8x128xf32>
    %69 = vector.broadcast %66 : vector<1x128xf32> to vector<8x128xf32>
    %70 = arith.subf %69, %68 : vector<8x128xf32>
    %c0_83 = arith.constant 0 : index
    %c5 = arith.constant 5 : index
    %c0_84 = arith.constant 0 : index
    %c0_85 = arith.constant 0 : index
    %71 = vector.load %arg20[%c0_83, %c5, %c0_84, %c0_85] : memref<1x8x8x1xf32, #tpu.memory_space<vmem>>, vector<1x1x8x1xf32>
    %72 = vector.shape_cast %71 : vector<1x1x8x1xf32> to vector<8x1xf32>
    %73 = vector.broadcast %72 : vector<8x1xf32> to vector<8x128xf32>
    %74 = arith.mulf %70, %73 : vector<8x128xf32>
    %c0_86 = arith.constant 0 : index
    %c5_87 = arith.constant 5 : index
    %c0_88 = arith.constant 0 : index
    %c0_89 = arith.constant 0 : index
    %75 = vector.load %arg21[%c0_86, %c5_87, %c0_88, %c0_89] : memref<1x8x8x128xf32, #tpu.memory_space<vmem>>, vector<1x1x8x128xf32>
    %76 = vector.shape_cast %75 : vector<1x1x8x128xf32> to vector<8x128xf32>
    %77 = vector.shape_cast %74 : vector<8x128xf32> to vector<1x1x8x128xf32>
    tpu.vector_store %arg21[%c0_86, %c5_87, %c0_88, %c0_89], %77 {strides = array<i32>} : memref<1x8x8x128xf32, #tpu.memory_space<vmem>>, vector<1x1x8x128xf32>,
    %c0_90 = arith.constant 0 : index
    %c0_91 = arith.constant 0 : index
    %c0_92 = arith.constant 0 : index
    %c0_93 = arith.constant 0 : index
    %78 = vector.load %arg10[%c0_90, %c0_91, %c0_92, %c0_93] : memref<1x1x1x128xf32, #tpu.memory_space<vmem>>, vector<1x1x1x128xf32>
    %79 = vector.shape_cast %78 : vector<1x1x1x128xf32> to vector<1x128xf32>
    %c0_94 = arith.constant 0 : index
    %c0_95 = arith.constant 0 : index
    %c0_96 = arith.constant 0 : index
    %c0_97 = arith.constant 0 : index
    %80 = vector.load %arg18[%c0_94, %c0_95, %c0_96, %c0_97] : memref<1x1x8x128xf32, #tpu.memory_space<vmem>>, vector<1x1x8x128xf32>
    %81 = vector.shape_cast %80 : vector<1x1x8x128xf32> to vector<8x128xf32>
    %82 = vector.broadcast %79 : vector<1x128xf32> to vector<8x128xf32>
    %83 = arith.subf %82, %81 : vector<8x128xf32>
    %c0_98 = arith.constant 0 : index
    %c6 = arith.constant 6 : index
    %c0_99 = arith.constant 0 : index
    %c0_100 = arith.constant 0 : index
    %84 = vector.load %arg20[%c0_98, %c6, %c0_99, %c0_100] : memref<1x8x8x1xf32, #tpu.memory_space<vmem>>, vector<1x1x8x1xf32>
    %85 = vector.shape_cast %84 : vector<1x1x8x1xf32> to vector<8x1xf32>
    %86 = vector.broadcast %85 : vector<8x1xf32> to vector<8x128xf32>
    %87 = arith.mulf %83, %86 : vector<8x128xf32>
    %c0_101 = arith.constant 0 : index
    %c6_102 = arith.constant 6 : index
    %c0_103 = arith.constant 0 : index
    %c0_104 = arith.constant 0 : index
    %88 = vector.load %arg21[%c0_101, %c6_102, %c0_103, %c0_104] : memref<1x8x8x128xf32, #tpu.memory_space<vmem>>, vector<1x1x8x128xf32>
    %89 = vector.shape_cast %88 : vector<1x1x8x128xf32> to vector<8x128xf32>
    %90 = vector.shape_cast %87 : vector<8x128xf32> to vector<1x1x8x128xf32>
    tpu.vector_store %arg21[%c0_101, %c6_102, %c0_103, %c0_104], %90 {strides = array<i32>} : memref<1x8x8x128xf32, #tpu.memory_space<vmem>>, vector<1x1x8x128xf32>,
    %c0_105 = arith.constant 0 : index
    %c0_106 = arith.constant 0 : index
    %c0_107 = arith.constant 0 : index
    %c0_108 = arith.constant 0 : index
    %91 = vector.load %arg11[%c0_105, %c0_106, %c0_107, %c0_108] : memref<1x1x1x128xf32, #tpu.memory_space<vmem>>, vector<1x1x1x128xf32>
    %92 = vector.shape_cast %91 : vector<1x1x1x128xf32> to vector<1x128xf32>
    %c0_109 = arith.constant 0 : index
    %c0_110 = arith.constant 0 : index
    %c0_111 = arith.constant 0 : index
    %c0_112 = arith.constant 0 : index
    %93 = vector.load %arg19[%c0_109, %c0_110, %c0_111, %c0_112] : memref<1x1x8x128xf32, #tpu.memory_space<vmem>>, vector<1x1x8x128xf32>
    %94 = vector.shape_cast %93 : vector<1x1x8x128xf32> to vector<8x128xf32>
    %95 = vector.broadcast %92 : vector<1x128xf32> to vector<8x128xf32>
    %96 = arith.subf %95, %94 : vector<8x128xf32>
    %c0_113 = arith.constant 0 : index
    %c7 = arith.constant 7 : index
    %c0_114 = arith.constant 0 : index
    %c0_115 = arith.constant 0 : index
    %97 = vector.load %arg20[%c0_113, %c7, %c0_114, %c0_115] : memref<1x8x8x1xf32, #tpu.memory_space<vmem>>, vector<1x1x8x1xf32>
    %98 = vector.shape_cast %97 : vector<1x1x8x1xf32> to vector<8x1xf32>
    %99 = vector.broadcast %98 : vector<8x1xf32> to vector<8x128xf32>
    %100 = arith.mulf %96, %99 : vector<8x128xf32>
    %c0_116 = arith.constant 0 : index
    %c7_117 = arith.constant 7 : index
    %c0_118 = arith.constant 0 : index
    %c0_119 = arith.constant 0 : index
    %101 = vector.load %arg21[%c0_116, %c7_117, %c0_118, %c0_119] : memref<1x8x8x128xf32, #tpu.memory_space<vmem>>, vector<1x1x8x128xf32>
    %102 = vector.shape_cast %101 : vector<1x1x8x128xf32> to vector<8x128xf32>
    %103 = vector.shape_cast %100 : vector<8x128xf32> to vector<1x1x8x128xf32>
    tpu.vector_store %arg21[%c0_116, %c7_117, %c0_118, %c0_119], %103 {strides = array<i32>} : memref<1x8x8x128xf32, #tpu.memory_space<vmem>>, vector<1x1x8x128xf32>,
    return
  }
  func.func @transform_0(%arg0: i32, %arg1: i32, %arg2: memref<2x8xi32, #tpu.memory_space<smem>>, %arg3: memref<2x8xi32, #tpu.memory_space<smem>>) -> (i32, i32, i32, i32) {
    %c8_i32 = arith.constant 8 : i32
    %0 = arith.muli %arg1, %c8_i32 : i32
    %c0_i32 = arith.constant 0 : i32
    %1 = arith.addi %0, %c0_i32 : i32
    %2 = arith.index_cast %arg0 : i32 to index
    %3 = arith.index_cast %1 : i32 to index
    %4 = memref.load %arg3[%2, %3] : memref<2x8xi32, #tpu.memory_space<smem>>
    %c0_i32_0 = arith.constant 0 : i32
    %c0_i32_1 = arith.constant 0 : i32
    %c0_i32_2 = arith.constant 0 : i32
    return %arg0, %4, %c0_i32_0, %c0_i32_1 : i32, i32, i32, i32
  }
  func.func @transform_1(%arg0: i32, %arg1: i32, %arg2: memref<2x8xi32, #tpu.memory_space<smem>>, %arg3: memref<2x8xi32, #tpu.memory_space<smem>>) -> (i32, i32, i32, i32) {
    %c8_i32 = arith.constant 8 : i32
    %0 = arith.muli %arg1, %c8_i32 : i32
    %c1_i32 = arith.constant 1 : i32
    %1 = arith.addi %0, %c1_i32 : i32
    %2 = arith.index_cast %arg0 : i32 to index
    %3 = arith.index_cast %1 : i32 to index
    %4 = memref.load %arg3[%2, %3] : memref<2x8xi32, #tpu.memory_space<smem>>
    %c0_i32 = arith.constant 0 : i32
    %c0_i32_0 = arith.constant 0 : i32
    %c0_i32_1 = arith.constant 0 : i32
    return %arg0, %4, %c0_i32, %c0_i32_0 : i32, i32, i32, i32
  }
  func.func @transform_2(%arg0: i32, %arg1: i32, %arg2: memref<2x8xi32, #tpu.memory_space<smem>>, %arg3: memref<2x8xi32, #tpu.memory_space<smem>>) -> (i32, i32, i32, i32) {
    %c8_i32 = arith.constant 8 : i32
    %0 = arith.muli %arg1, %c8_i32 : i32
    %c2_i32 = arith.constant 2 : i32
    %1 = arith.addi %0, %c2_i32 : i32
    %2 = arith.index_cast %arg0 : i32 to index
    %3 = arith.index_cast %1 : i32 to index
    %4 = memref.load %arg3[%2, %3] : memref<2x8xi32, #tpu.memory_space<smem>>
    %c0_i32 = arith.constant 0 : i32
    %c0_i32_0 = arith.constant 0 : i32
    %c0_i32_1 = arith.constant 0 : i32
    return %arg0, %4, %c0_i32, %c0_i32_0 : i32, i32, i32, i32
  }
  func.func @transform_3(%arg0: i32, %arg1: i32, %arg2: memref<2x8xi32, #tpu.memory_space<smem>>, %arg3: memref<2x8xi32, #tpu.memory_space<smem>>) -> (i32, i32, i32, i32) {
    %c8_i32 = arith.constant 8 : i32
    %0 = arith.muli %arg1, %c8_i32 : i32
    %c3_i32 = arith.constant 3 : i32
    %1 = arith.addi %0, %c3_i32 : i32
    %2 = arith.index_cast %arg0 : i32 to index
    %3 = arith.index_cast %1 : i32 to index
    %4 = memref.load %arg3[%2, %3] : memref<2x8xi32, #tpu.memory_space<smem>>
    %c0_i32 = arith.constant 0 : i32
    %c0_i32_0 = arith.constant 0 : i32
    %c0_i32_1 = arith.constant 0 : i32
    return %arg0, %4, %c0_i32, %c0_i32_0 : i32, i32, i32, i32
  }
  func.func @transform_4(%arg0: i32, %arg1: i32, %arg2: memref<2x8xi32, #tpu.memory_space<smem>>, %arg3: memref<2x8xi32, #tpu.memory_space<smem>>) -> (i32, i32, i32, i32) {
    %c8_i32 = arith.constant 8 : i32
    %0 = arith.muli %arg1, %c8_i32 : i32
    %c4_i32 = arith.constant 4 : i32
    %1 = arith.addi %0, %c4_i32 : i32
    %2 = arith.index_cast %arg0 : i32 to index
    %3 = arith.index_cast %1 : i32 to index
    %4 = memref.load %arg3[%2, %3] : memref<2x8xi32, #tpu.memory_space<smem>>
    %c0_i32 = arith.constant 0 : i32
    %c0_i32_0 = arith.constant 0 : i32
    %c0_i32_1 = arith.constant 0 : i32
    return %arg0, %4, %c0_i32, %c0_i32_0 : i32, i32, i32, i32
  }
  func.func @transform_5(%arg0: i32, %arg1: i32, %arg2: memref<2x8xi32, #tpu.memory_space<smem>>, %arg3: memref<2x8xi32, #tpu.memory_space<smem>>) -> (i32, i32, i32, i32) {
    %c8_i32 = arith.constant 8 : i32
    %0 = arith.muli %arg1, %c8_i32 : i32
    %c5_i32 = arith.constant 5 : i32
    %1 = arith.addi %0, %c5_i32 : i32
    %2 = arith.index_cast %arg0 : i32 to index
    %3 = arith.index_cast %1 : i32 to index
    %4 = memref.load %arg3[%2, %3] : memref<2x8xi32, #tpu.memory_space<smem>>
    %c0_i32 = arith.constant 0 : i32
    %c0_i32_0 = arith.constant 0 : i32
    %c0_i32_1 = arith.constant 0 : i32
    return %arg0, %4, %c0_i32, %c0_i32_0 : i32, i32, i32, i32
  }
  func.func @transform_6(%arg0: i32, %arg1: i32, %arg2: memref<2x8xi32, #tpu.memory_space<smem>>, %arg3: memref<2x8xi32, #tpu.memory_space<smem>>) -> (i32, i32, i32, i32) {
    %c8_i32 = arith.constant 8 : i32
    %0 = arith.muli %arg1, %c8_i32 : i32
    %c6_i32 = arith.constant 6 : i32
    %1 = arith.addi %0, %c6_i32 : i32
    %2 = arith.index_cast %arg0 : i32 to index
    %3 = arith.index_cast %1 : i32 to index
    %4 = memref.load %arg3[%2, %3] : memref<2x8xi32, #tpu.memory_space<smem>>
    %c0_i32 = arith.constant 0 : i32
    %c0_i32_0 = arith.constant 0 : i32
    %c0_i32_1 = arith.constant 0 : i32
    return %arg0, %4, %c0_i32, %c0_i32_0 : i32, i32, i32, i32
  }
  func.func @transform_7(%arg0: i32, %arg1: i32, %arg2: memref<2x8xi32, #tpu.memory_space<smem>>, %arg3: memref<2x8xi32, #tpu.memory_space<smem>>) -> (i32, i32, i32, i32) {
    %c8_i32 = arith.constant 8 : i32
    %0 = arith.muli %arg1, %c8_i32 : i32
    %c7_i32 = arith.constant 7 : i32
    %1 = arith.addi %0, %c7_i32 : i32
    %2 = arith.index_cast %arg0 : i32 to index
    %3 = arith.index_cast %1 : i32 to index
    %4 = memref.load %arg3[%2, %3] : memref<2x8xi32, #tpu.memory_space<smem>>
    %c0_i32 = arith.constant 0 : i32
    %c0_i32_0 = arith.constant 0 : i32
    %c0_i32_1 = arith.constant 0 : i32
    return %arg0, %4, %c0_i32, %c0_i32_0 : i32, i32, i32, i32
  }
  func.func @transform_8(%arg0: i32, %arg1: i32, %arg2: memref<2x8xi32, #tpu.memory_space<smem>>, %arg3: memref<2x8xi32, #tpu.memory_space<smem>>) -> (i32, i32, i32, i32) {
    %c8_i32 = arith.constant 8 : i32
    %0 = arith.muli %arg1, %c8_i32 : i32
    %c0_i32 = arith.constant 0 : i32
    %1 = arith.addi %0, %c0_i32 : i32
    %2 = arith.index_cast %arg0 : i32 to index
    %3 = arith.index_cast %1 : i32 to index
    %4 = memref.load %arg2[%2, %3] : memref<2x8xi32, #tpu.memory_space<smem>>
    %c0_i32_0 = arith.constant 0 : i32
    %c0_i32_1 = arith.constant 0 : i32
    %c0_i32_2 = arith.constant 0 : i32
    return %arg0, %4, %c0_i32_0, %c0_i32_1 : i32, i32, i32, i32
  }
  func.func @transform_9(%arg0: i32, %arg1: i32, %arg2: memref<2x8xi32, #tpu.memory_space<smem>>, %arg3: memref<2x8xi32, #tpu.memory_space<smem>>) -> (i32, i32, i32, i32) {
    %c8_i32 = arith.constant 8 : i32
    %0 = arith.muli %arg1, %c8_i32 : i32
    %c1_i32 = arith.constant 1 : i32
    %1 = arith.addi %0, %c1_i32 : i32
    %2 = arith.index_cast %arg0 : i32 to index
    %3 = arith.index_cast %1 : i32 to index
    %4 = memref.load %arg2[%2, %3] : memref<2x8xi32, #tpu.memory_space<smem>>
    %c0_i32 = arith.constant 0 : i32
    %c0_i32_0 = arith.constant 0 : i32
    %c0_i32_1 = arith.constant 0 : i32
    return %arg0, %4, %c0_i32, %c0_i32_0 : i32, i32, i32, i32
  }
  func.func @transform_10(%arg0: i32, %arg1: i32, %arg2: memref<2x8xi32, #tpu.memory_space<smem>>, %arg3: memref<2x8xi32, #tpu.memory_space<smem>>) -> (i32, i32, i32, i32) {
    %c8_i32 = arith.constant 8 : i32
    %0 = arith.muli %arg1, %c8_i32 : i32
    %c2_i32 = arith.constant 2 : i32
    %1 = arith.addi %0, %c2_i32 : i32
    %2 = arith.index_cast %arg0 : i32 to index
    %3 = arith.index_cast %1 : i32 to index
    %4 = memref.load %arg2[%2, %3] : memref<2x8xi32, #tpu.memory_space<smem>>
    %c0_i32 = arith.constant 0 : i32
    %c0_i32_0 = arith.constant 0 : i32
    %c0_i32_1 = arith.constant 0 : i32
    return %arg0, %4, %c0_i32, %c0_i32_0 : i32, i32, i32, i32
  }
  func.func @transform_11(%arg0: i32, %arg1: i32, %arg2: memref<2x8xi32, #tpu.memory_space<smem>>, %arg3: memref<2x8xi32, #tpu.memory_space<smem>>) -> (i32, i32, i32, i32) {
    %c8_i32 = arith.constant 8 : i32
    %0 = arith.muli %arg1, %c8_i32 : i32
    %c3_i32 = arith.constant 3 : i32
    %1 = arith.addi %0, %c3_i32 : i32
    %2 = arith.index_cast %arg0 : i32 to index
    %3 = arith.index_cast %1 : i32 to index
    %4 = memref.load %arg2[%2, %3] : memref<2x8xi32, #tpu.memory_space<smem>>
    %c0_i32 = arith.constant 0 : i32
    %c0_i32_0 = arith.constant 0 : i32
    %c0_i32_1 = arith.constant 0 : i32
    return %arg0, %4, %c0_i32, %c0_i32_0 : i32, i32, i32, i32
  }
  func.func @transform_12(%arg0: i32, %arg1: i32, %arg2: memref<2x8xi32, #tpu.memory_space<smem>>, %arg3: memref<2x8xi32, #tpu.memory_space<smem>>) -> (i32, i32, i32, i32) {
    %c8_i32 = arith.constant 8 : i32
    %0 = arith.muli %arg1, %c8_i32 : i32
    %c4_i32 = arith.constant 4 : i32
    %1 = arith.addi %0, %c4_i32 : i32
    %2 = arith.index_cast %arg0 : i32 to index
    %3 = arith.index_cast %1 : i32 to index
    %4 = memref.load %arg2[%2, %3] : memref<2x8xi32, #tpu.memory_space<smem>>
    %c0_i32 = arith.constant 0 : i32
    %c0_i32_0 = arith.constant 0 : i32
    %c0_i32_1 = arith.constant 0 : i32
    return %arg0, %4, %c0_i32, %c0_i32_0 : i32, i32, i32, i32
  }
  func.func @transform_13(%arg0: i32, %arg1: i32, %arg2: memref<2x8xi32, #tpu.memory_space<smem>>, %arg3: memref<2x8xi32, #tpu.memory_space<smem>>) -> (i32, i32, i32, i32) {
    %c8_i32 = arith.constant 8 : i32
    %0 = arith.muli %arg1, %c8_i32 : i32
    %c5_i32 = arith.constant 5 : i32
    %1 = arith.addi %0, %c5_i32 : i32
    %2 = arith.index_cast %arg0 : i32 to index
    %3 = arith.index_cast %1 : i32 to index
    %4 = memref.load %arg2[%2, %3] : memref<2x8xi32, #tpu.memory_space<smem>>
    %c0_i32 = arith.constant 0 : i32
    %c0_i32_0 = arith.constant 0 : i32
    %c0_i32_1 = arith.constant 0 : i32
    return %arg0, %4, %c0_i32, %c0_i32_0 : i32, i32, i32, i32
  }
  func.func @transform_14(%arg0: i32, %arg1: i32, %arg2: memref<2x8xi32, #tpu.memory_space<smem>>, %arg3: memref<2x8xi32, #tpu.memory_space<smem>>) -> (i32, i32, i32, i32) {
    %c8_i32 = arith.constant 8 : i32
    %0 = arith.muli %arg1, %c8_i32 : i32
    %c6_i32 = arith.constant 6 : i32
    %1 = arith.addi %0, %c6_i32 : i32
    %2 = arith.index_cast %arg0 : i32 to index
    %3 = arith.index_cast %1 : i32 to index
    %4 = memref.load %arg2[%2, %3] : memref<2x8xi32, #tpu.memory_space<smem>>
    %c0_i32 = arith.constant 0 : i32
    %c0_i32_0 = arith.constant 0 : i32
    %c0_i32_1 = arith.constant 0 : i32
    return %arg0, %4, %c0_i32, %c0_i32_0 : i32, i32, i32, i32
  }
  func.func @transform_15(%arg0: i32, %arg1: i32, %arg2: memref<2x8xi32, #tpu.memory_space<smem>>, %arg3: memref<2x8xi32, #tpu.memory_space<smem>>) -> (i32, i32, i32, i32) {
    %c8_i32 = arith.constant 8 : i32
    %0 = arith.muli %arg1, %c8_i32 : i32
    %c7_i32 = arith.constant 7 : i32
    %1 = arith.addi %0, %c7_i32 : i32
    %2 = arith.index_cast %arg0 : i32 to index
    %3 = arith.index_cast %1 : i32 to index
    %4 = memref.load %arg2[%2, %3] : memref<2x8xi32, #tpu.memory_space<smem>>
    %c0_i32 = arith.constant 0 : i32
    %c0_i32_0 = arith.constant 0 : i32
    %c0_i32_1 = arith.constant 0 : i32
    return %arg0, %4, %c0_i32, %c0_i32_0 : i32, i32, i32, i32
  }
  func.func @transform_16(%arg0: i32, %arg1: i32, %arg2: memref<2x8xi32, #tpu.memory_space<smem>>, %arg3: memref<2x8xi32, #tpu.memory_space<smem>>) -> (i32, i32, i32, i32) {
    %c0_i32 = arith.constant 0 : i32
    %c0_i32_0 = arith.constant 0 : i32
    %c0_i32_1 = arith.constant 0 : i32
    return %arg0, %arg1, %c0_i32, %c0_i32_0 : i32, i32, i32, i32
  }
  func.func @transform_17(%arg0: i32, %arg1: i32, %arg2: memref<2x8xi32, #tpu.memory_space<smem>>, %arg3: memref<2x8xi32, #tpu.memory_space<smem>>) -> (i32, i32, i32, i32) {
    %c0_i32 = arith.constant 0 : i32
    %c0_i32_0 = arith.constant 0 : i32
    %c0_i32_1 = arith.constant 0 : i32
    return %arg0, %arg1, %c0_i32, %c0_i32_0 : i32, i32, i32, i32
  }
}

</mosaic_0001>

<llo_original>
// kernel: tpu_custom_call.1
$region0: #{tpu_custom_call.1}
  #allocation0 [shape = 'u32[]', space=smem, size = 0x4, offset = 0x4, fixed_abs, tag = 'smem constant byte address 0x4 - core index']
  #allocation1 [shape = 'u32[144,128]{1,0:T(1,128)}', space=vmem, size = 0x12000, scoped, tag = 'internal scratch']
  #allocation2 [shape = 's32[1]{0}', space=sflag, size = 0x4, scoped, tag = 'scoped memory for tpu_custom_call.1']
  #allocation3 [shape = 'u8[1024]{0}', space=smem, size = 0x400, scoped, tag = 'prefetched SMEM operand 0']
  #allocation4 [shape = 'u8[1024]{0}', space=smem, size = 0x400, scoped, tag = 'prefetched SMEM operand 1']
  %s0 = inlined_call_operand.hbm [shape: s32[2,8], index: 0, kind: input, shape index: {}]
  %s1 = inlined_call_operand.hbm [shape: s32[2,8], index: 1, kind: input, shape index: {}]
  %s2 = inlined_call_operand.vmem [shape: f32[2,8,1,128], index: 2, kind: input, shape index: {}]
  %s3 = inlined_call_operand.vmem [shape: f32[2,8,1,128], index: 3, kind: input, shape index: {}]
  %s4 = inlined_call_operand.vmem [shape: f32[2,8,1,128], index: 4, kind: input, shape index: {}]
  %s5 = inlined_call_operand.vmem [shape: f32[2,8,1,128], index: 5, kind: input, shape index: {}]
  %s6 = inlined_call_operand.hbm [shape: f32[2,8,1,128], index: 6, kind: input, shape index: {}]
  %s7 = inlined_call_operand.hbm [shape: f32[2,8,1,128], index: 7, kind: input, shape index: {}]
  %s8 = inlined_call_operand.hbm [shape: f32[2,8,1,128], index: 8, kind: input, shape index: {}]
  %s9 = inlined_call_operand.hbm [shape: f32[2,8,1,128], index: 9, kind: input, shape index: {}]
  %s10 = inlined_call_operand.vmem [shape: f32[2,6,8,128], index: 10, kind: input, shape index: {}]
  %s11 = inlined_call_operand.hbm [shape: f32[2,6,8,128], index: 11, kind: input, shape index: {}]
  %s12 = inlined_call_operand.hbm [shape: f32[2,6,8,128], index: 12, kind: input, shape index: {}]
  %s13 = inlined_call_operand.hbm [shape: f32[2,6,8,128], index: 13, kind: input, shape index: {}]
  %s14 = inlined_call_operand.hbm [shape: f32[2,6,8,128], index: 14, kind: input, shape index: {}]
  %s15 = inlined_call_operand.hbm [shape: f32[2,6,8,128], index: 15, kind: input, shape index: {}]
  %s16 = inlined_call_operand.hbm [shape: f32[2,6,8,128], index: 16, kind: input, shape index: {}]
  %s17 = inlined_call_operand.hbm [shape: f32[2,6,8,128], index: 17, kind: input, shape index: {}]
  %s18 = inlined_call_operand.vmem [shape: f32[2,8,8,1], index: 18, kind: input, shape index: {}]
  %s19 = inlined_call_operand.hbm [shape: f32[2,8,8,128], index: 19, kind: output, shape index: {}]
  %s20 = sld [smem:[#allocation0]]
  $region145: #{tpu_custom_call.1} parent=0
    _
  %s22 = ssub.s32 1, %s20
  %s23 = scalar_select 0, %s22, %s20
  %25 = dma.hbm_to_smem %s0, 32, [#allocation3], [#allocation2]
  %27 = dma.hbm_to_smem %s1, 32, [#allocation4], [#allocation2]
  %28 = dma.done [#allocation2], 64
  %29 = sfence
  $region1: #{tpu_custom_call.1} parent=0
    #allocation5 [shape = 'u8[1024]{0}', space=vmem, size = 0x400, scoped, tag = 'input window, operand 6']
    #allocation6 [shape = 's32[2]{0}', space=sflag, size = 0x8, scoped, tag = 'scoped memory for tpu_custom_call.1']
    #allocation7 [shape = 's32[2]{0}', space=sflag, size = 0x8, scoped, tag = 'scoped memory for tpu_custom_call.1']
    #allocation8 [shape = 'u8[1024]{0}', space=vmem, size = 0x400, scoped, tag = 'input window, operand 7']
    #allocation9 [shape = 's32[2]{0}', space=sflag, size = 0x8, scoped, tag = 'scoped memory for tpu_custom_call.1']
    #allocation10 [shape = 'u8[1024]{0}', space=vmem, size = 0x400, scoped, tag = 'input window, operand 8']
    #allocation11 [shape = 'u8[1024]{0}', space=vmem, size = 0x400, scoped, tag = 'input window, operand 9']
    #allocation12 [shape = 's32[2]{0}', space=sflag, size = 0x8, scoped, tag = 'scoped memory for tpu_custom_call.1']
    #allocation13 [shape = 'u8[8192]{0}', space=vmem, size = 0x2000, scoped, tag = 'input window, operand 11']
    #allocation14 [shape = 'u8[8192]{0}', space=vmem, size = 0x2000, scoped, tag = 'input window, operand 12']
    #allocation15 [shape = 's32[2]{0}', space=sflag, size = 0x8, scoped, tag = 'scoped memory for tpu_custom_call.1']
    #allocation16 [shape = 'u8[8192]{0}', space=vmem, size = 0x2000, scoped, tag = 'input window, operand 13']
    #allocation17 [shape = 'u8[8192]{0}', space=vmem, size = 0x2000, scoped, tag = 'input window, operand 14']
    #allocation18 [shape = 's32[2]{0}', space=sflag, size = 0x8, scoped, tag = 'scoped memory for tpu_custom_call.1']
    #allocation19 [shape = 'u8[8192]{0}', space=vmem, size = 0x2000, scoped, tag = 'input window, operand 15']
    #allocation20 [shape = 'u8[8192]{0}', space=vmem, size = 0x2000, scoped, tag = 'input window, operand 16']
    #allocation21 [shape = 's32[2]{0}', space=sflag, size = 0x8, scoped, tag = 'scoped memory for tpu_custom_call.1']
    #allocation22 [shape = 'u8[8192]{0}', space=vmem, size = 0x2000, scoped, tag = 'input window, operand 17']
    #allocation23 [shape = 'u8[65536]{0}', space=vmem, size = 0x10000, scoped, tag = 'output window, operand 0']
    %30 = vsyncpa [#allocation6], 0
    %s31 = scalar_lea.sflag [#allocation6], 1
    %32 = vsyncpa %s31, 0
    %33 = vsyncpa [#allocation9], 0
    %s34 = scalar_lea.sflag [#allocation9], 1
    %35 = vsyncpa %s34, 0
    %36 = vsyncpa [#allocation12], 0
    %s37 = scalar_lea.sflag [#allocation12], 1
    %38 = vsyncpa %s37, 0
    %39 = vsyncpa [#allocation15], 0
    %s40 = scalar_lea.sflag [#allocation15], 1
    %41 = vsyncpa %s40, 0
    %42 = vsyncpa [#allocation18], 0
    %s43 = scalar_lea.sflag [#allocation18], 1
    %44 = vsyncpa %s43, 0
    %45 = vsyncpa [#allocation21], 0
    %s46 = scalar_lea.sflag [#allocation21], 1
    %47 = vsyncpa %s46, 0
    %48 = vsyncpa [#allocation7], 0
    %s49 = scalar_lea.sflag [#allocation7], 1
    %50 = vsyncpa %s49, 0
    loop: start=0, step=1, limit=4
    $region2: #{tpu_custom_call.1} parent=1 // loop_pre_header
      _
    $region3: #{tpu_custom_call.1} parent=1 // loop_header
      %s52 = sphi 0, %s56
      %p53 = scmp.ge.s32.totalorder %s52, 4
      %s59 = sphi 0, %s71
      %s60 = sphi 0, %s67
      %s61 = sphi 0, %s59
      %s62 = sphi 0, %s60
      %s63 = sphi 0, %s61
      %s64 = sphi 0, %s62
      %s94 = sphi 0, %s96
      %s97 = sphi 0, %s94
      %s98 = sphi 0, %s97
      %s114 = sphi 0, %s98
      %s142 = sphi 0, %s144
      %s145 = sphi 0, %s142
      %s146 = sphi 0, %s145
      %s162 = sphi 0, %s146
      %s190 = sphi 0, %s192
      %s193 = sphi 0, %s190
      %s194 = sphi 0, %s193
      %s210 = sphi 0, %s194
      %s238 = sphi 0, %s240
      %s241 = sphi 0, %s238
      %s242 = sphi 0, %s241
      %s258 = sphi 0, %s242
      %s286 = sphi 0, %s288
      %s289 = sphi 0, %s286
      %s290 = sphi 0, %s289
      %s306 = sphi 0, %s290
      %s334 = sphi 0, %s336
      %s337 = sphi 0, %s334
      %s338 = sphi 0, %s337
      %s354 = sphi 0, %s338
      %s382 = sphi 0, %s384
      %s385 = sphi 0, %s382
      %s386 = sphi 0, %s385
      %s402 = sphi 0, %s386
      %s430 = sphi 0, %s432
      %s433 = sphi 0, %s430
      %s434 = sphi 0, %s433
      %s450 = sphi 0, %s434
      %s476 = sphi 0, %s478
      %s479 = sphi 0, %s476
      %s480 = sphi 0, %s479
      %s496 = sphi 0, %s480
      %s524 = sphi 0, %s526
      %s527 = sphi 0, %s524
      %s528 = sphi 0, %s527
      %s544 = sphi 0, %s528
      %s572 = sphi 0, %s574
      %s575 = sphi 0, %s572
      %s576 = sphi 0, %s575
      %s592 = sphi 0, %s576
      %s620 = sphi 0, %s622
      %s623 = sphi 0, %s620
      %s624 = sphi 0, %s623
      %s640 = sphi 0, %s624
      %s668 = sphi 0, %s670
      %s671 = sphi 0, %s668
      %s672 = sphi 0, %s671
      %s688 = sphi 0, %s672
      %s716 = sphi 0, %s718
      %s719 = sphi 0, %s716
      %s720 = sphi 0, %s719
      %s736 = sphi 0, %s720
      %s764 = sphi 0, %s766
      %s767 = sphi 0, %s764
      %s768 = sphi 0, %s767
      %s784 = sphi 0, %s768
      %s812 = sphi 0, %s814
      %s815 = sphi 0, %s812
      %s816 = sphi 0, %s815
      %s832 = sphi 0, %s816
      %s840 = sphi 0, %s842
      %s843 = sphi 0, %s840
      %s844 = sphi 0, %s843
      %s860 = sphi 0, %s844
      %s868 = sphi 0, %s870
      %s871 = sphi 0, %s868
      %s872 = sphi 0, %s871
      %s888 = sphi 0, %s872
    $region4: #{tpu_custom_call.1} parent=1 // loop_header_branch
      %55 = sbr.rel (%p53) target = $region8
    $region5: #{tpu_custom_call.1} parent=1 // loop_body
      %s57 = ssub.s32 %s52, 1
      %s58 = ssub.s32 %s52, 2
      %s65 = sadd.s32 1, %s60
      %p66 = scmp.ge.s32.totalorder %s65, 1
      %s67 = scalar_select %p66, 0, %s65
      %s68 = sadd.s32 1, %s59
      %s69 = scalar_select %p66, %s68, %s59
      %p70 = scmp.ge.s32.totalorder %s69, 2
      %s71 = scalar_select %p70, 0, %s69
      %s72 = smul.u32 %s60, 8
      %s73 = sshra.s32 %s72, 7
      %s74 = sand.u32 %s72, 127
      %s75 = sadd.s32 %s73, %s59
      %s76 = smul.u32 %s75, 128
      %s77 = sshra.s32 %s72, 7
      %s78 = sand.u32 %s72, 127
      %s79 = sadd.s32 %s76, %s78
      %s80 = sld [smem:[#allocation4 + %s79]]
      %s81 = smul.u32 %s67, 8
      %s82 = sshra.s32 %s81, 7
      %s83 = sand.u32 %s81, 127
      %s84 = sadd.s32 %s82, %s71
      %s85 = smul.u32 %s84, 128
      %s86 = sshra.s32 %s81, 7
      %s87 = sand.u32 %s81, 127
      %s88 = sadd.s32 %s85, %s87
      %s89 = sld [smem:[#allocation4 + %s88]]
      %s90 = ssub.s32 %s59, %s71
      %s91 = ssub.s32 %s80, %s89
      %s92 = sor.u32 %s90, %s91
      %p93 = scmp.eq.s32.totalorder %s92, 0
      %s95 = sadd.s32 %s94, 1
      %s96 = scalar_select %p93, %s94, %s95
      %p99 = pneg %p93
      %p100 = scmp.eq.s32.totalorder %s52, 1
      %p101 = por %p99, %p100
      %p102 = scmp.ne.s32.totalorder %s94, %s97
      %p103 = scmp.eq.s32.totalorder %s52, 0
      %p104 = por %p102, %p103
      %p105 = scmp.ne.s32.totalorder %s94, %s97
      %p106 = scmp.eq.s32.totalorder %s57, 1
      %p107 = por %p105, %p106
      %p108 = scmp.ne.s32.totalorder %s97, %s98
      %p109 = scmp.eq.s32.totalorder %s57, 0
      %p110 = por %p108, %p109
      %p111 = scmp.ne.s32.totalorder %s97, %s98
      %p112 = scmp.eq.s32.totalorder %s58, 1
      %p113 = por %p111, %p112
      %p115 = scmp.ne.s32.totalorder %s98, %s114
      %p116 = scmp.eq.s32.totalorder %s58, 0
      %p117 = por %p115, %p116
      %s118 = smul.u32 %s60, 8
      %s119 = sadd.s32 %s118, 1
      %s120 = sshra.s32 %s119, 7
      %s121 = sand.u32 %s119, 127
      %s122 = sadd.s32 %s120, %s59
      %s123 = smul.u32 %s122, 128
      %s124 = sshra.s32 %s119, 7
      %s125 = sand.u32 %s119, 127
      %s126 = sadd.s32 %s123, %s125
      %s127 = sld [smem:[#allocation4 + %s126]]
      %s128 = smul.u32 %s67, 8
      %s129 = sadd.s32 %s128, 1
      %s130 = sshra.s32 %s129, 7
      %s131 = sand.u32 %s129, 127
      %s132 = sadd.s32 %s130, %s71
      %s133 = smul.u32 %s132, 128
      %s134 = sshra.s32 %s129, 7
      %s135 = sand.u32 %s129, 127
      %s136 = sadd.s32 %s133, %s135
      %s137 = sld [smem:[#allocation4 + %s136]]
      %s138 = ssub.s32 %s59, %s71
      %s139 = ssub.s32 %s127, %s137
      %s140 = sor.u32 %s138, %s139
      %p141 = scmp.eq.s32.totalorder %s140, 0
      %s143 = sadd.s32 %s142, 1
      %s144 = scalar_select %p141, %s142, %s143
      %p147 = pneg %p141
      %p148 = scmp.eq.s32.totalorder %s52, 1
      %p149 = por %p147, %p148
      %p150 = scmp.ne.s32.totalorder %s142, %s145
      %p151 = scmp.eq.s32.totalorder %s52, 0
      %p152 = por %p150, %p151
      %p153 = scmp.ne.s32.totalorder %s142, %s145
      %p154 = scmp.eq.s32.totalorder %s57, 1
      %p155 = por %p153, %p154
      %p156 = scmp.ne.s32.totalorder %s145, %s146
      %p157 = scmp.eq.s32.totalorder %s57, 0
      %p158 = por %p156, %p157
      %p159 = scmp.ne.s32.totalorder %s145, %s146
      %p160 = scmp.eq.s32.totalorder %s58, 1
      %p161 = por %p159, %p160
      %p163 = scmp.ne.s32.totalorder %s146, %s162
      %p164 = scmp.eq.s32.totalorder %s58, 0
      %p165 = por %p163, %p164
      %s166 = smul.u32 %s60, 8
      %s167 = sadd.s32 %s166, 2
      %s168 = sshra.s32 %s167, 7
      %s169 = sand.u32 %s167, 127
      %s170 = sadd.s32 %s168, %s59
      %s171 = smul.u32 %s170, 128
      %s172 = sshra.s32 %s167, 7
      %s173 = sand.u32 %s167, 127
      %s174 = sadd.s32 %s171, %s173
      %s175 = sld [smem:[#allocation4 + %s174]]
      %s176 = smul.u32 %s67, 8
      %s177 = sadd.s32 %s176, 2
      %s178 = sshra.s32 %s177, 7
      %s179 = sand.u32 %s177, 127
      %s180 = sadd.s32 %s178, %s71
      %s181 = smul.u32 %s180, 128
      %s182 = sshra.s32 %s177, 7
      %s183 = sand.u32 %s177, 127
      %s184 = sadd.s32 %s181, %s183
      %s185 = sld [smem:[#allocation4 + %s184]]
      %s186 = ssub.s32 %s59, %s71
      %s187 = ssub.s32 %s175, %s185
      %s188 = sor.u32 %s186, %s187
      %p189 = scmp.eq.s32.totalorder %s188, 0
      %s191 = sadd.s32 %s190, 1
      %s192 = scalar_select %p189, %s190, %s191
      %p195 = pneg %p189
      %p196 = scmp.eq.s32.totalorder %s52, 1
      %p197 = por %p195, %p196
      %p198 = scmp.ne.s32.totalorder %s190, %s193
      %p199 = scmp.eq.s32.totalorder %s52, 0
      %p200 = por %p198, %p199
      %p201 = scmp.ne.s32.totalorder %s190, %s193
      %p202 = scmp.eq.s32.totalorder %s57, 1
      %p203 = por %p201, %p202
      %p204 = scmp.ne.s32.totalorder %s193, %s194
      %p205 = scmp.eq.s32.totalorder %s57, 0
      %p206 = por %p204, %p205
      %p207 = scmp.ne.s32.totalorder %s193, %s194
      %p208 = scmp.eq.s32.totalorder %s58, 1
      %p209 = por %p207, %p208
      %p211 = scmp.ne.s32.totalorder %s194, %s210
      %p212 = scmp.eq.s32.totalorder %s58, 0
      %p213 = por %p211, %p212
      %s214 = smul.u32 %s60, 8
      %s215 = sadd.s32 %s214, 3
      %s216 = sshra.s32 %s215, 7
      %s217 = sand.u32 %s215, 127
      %s218 = sadd.s32 %s216, %s59
      %s219 = smul.u32 %s218, 128
      %s220 = sshra.s32 %s215, 7
      %s221 = sand.u32 %s215, 127
      %s222 = sadd.s32 %s219, %s221
      %s223 = sld [smem:[#allocation4 + %s222]]
      %s224 = smul.u32 %s67, 8
      %s225 = sadd.s32 %s224, 3
      %s226 = sshra.s32 %s225, 7
      %s227 = sand.u32 %s225, 127
      %s228 = sadd.s32 %s226, %s71
      %s229 = smul.u32 %s228, 128
      %s230 = sshra.s32 %s225, 7
      %s231 = sand.u32 %s225, 127
      %s232 = sadd.s32 %s229, %s231
      %s233 = sld [smem:[#allocation4 + %s232]]
      %s234 = ssub.s32 %s59, %s71
      %s235 = ssub.s32 %s223, %s233
      %s236 = sor.u32 %s234, %s235
      %p237 = scmp.eq.s32.totalorder %s236, 0
      %s239 = sadd.s32 %s238, 1
      %s240 = scalar_select %p237, %s238, %s239
      %p243 = pneg %p237
      %p244 = scmp.eq.s32.totalorder %s52, 1
      %p245 = por %p243, %p244
      %p246 = scmp.ne.s32.totalorder %s238, %s241
      %p247 = scmp.eq.s32.totalorder %s52, 0
      %p248 = por %p246, %p247
      %p249 = scmp.ne.s32.totalorder %s238, %s241
      %p250 = scmp.eq.s32.totalorder %s57, 1
      %p251 = por %p249, %p250
      %p252 = scmp.ne.s32.totalorder %s241, %s242
      %p253 = scmp.eq.s32.totalorder %s57, 0
      %p254 = por %p252, %p253
      %p255 = scmp.ne.s32.totalorder %s241, %s242
      %p256 = scmp.eq.s32.totalorder %s58, 1
      %p257 = por %p255, %p256
      %p259 = scmp.ne.s32.totalorder %s242, %s258
      %p260 = scmp.eq.s32.totalorder %s58, 0
      %p261 = por %p259, %p260
      %s262 = smul.u32 %s60, 8
      %s263 = sadd.s32 %s262, 4
      %s264 = sshra.s32 %s263, 7
      %s265 = sand.u32 %s263, 127
      %s266 = sadd.s32 %s264, %s59
      %s267 = smul.u32 %s266, 128
      %s268 = sshra.s32 %s263, 7
      %s269 = sand.u32 %s263, 127
      %s270 = sadd.s32 %s267, %s269
      %s271 = sld [smem:[#allocation4 + %s270]]
      %s272 = smul.u32 %s67, 8
      %s273 = sadd.s32 %s272, 4
      %s274 = sshra.s32 %s273, 7
      %s275 = sand.u32 %s273, 127
      %s276 = sadd.s32 %s274, %s71
      %s277 = smul.u32 %s276, 128
      %s278 = sshra.s32 %s273, 7
      %s279 = sand.u32 %s273, 127
      %s280 = sadd.s32 %s277, %s279
      %s281 = sld [smem:[#allocation4 + %s280]]
      %s282 = ssub.s32 %s59, %s71
      %s283 = ssub.s32 %s271, %s281
      %s284 = sor.u32 %s282, %s283
      %p285 = scmp.eq.s32.totalorder %s284, 0
      %s287 = sadd.s32 %s286, 1
      %s288 = scalar_select %p285, %s286, %s287
      %p291 = pneg %p285
      %p292 = scmp.eq.s32.totalorder %s52, 1
      %p293 = por %p291, %p292
      %p294 = scmp.ne.s32.totalorder %s286, %s289
      %p295 = scmp.eq.s32.totalorder %s52, 0
      %p296 = por %p294, %p295
      %p297 = scmp.ne.s32.totalorder %s286, %s289
      %p298 = scmp.eq.s32.totalorder %s57, 1
      %p299 = por %p297, %p298
      %p300 = scmp.ne.s32.totalorder %s289, %s290
      %p301 = scmp.eq.s32.totalorder %s57, 0
      %p302 = por %p300, %p301
      %p303 = scmp.ne.s32.totalorder %s289, %s290
      %p304 = scmp.eq.s32.totalorder %s58, 1
      %p305 = por %p303, %p304
      %p307 = scmp.ne.s32.totalorder %s290, %s306
      %p308 = scmp.eq.s32.totalorder %s58, 0
      %p309 = por %p307, %p308
      %s310 = smul.u32 %s60, 8
      %s311 = sadd.s32 %s310, 5
      %s312 = sshra.s32 %s311, 7
      %s313 = sand.u32 %s311, 127
      %s314 = sadd.s32 %s312, %s59
      %s315 = smul.u32 %s314, 128
      %s316 = sshra.s32 %s311, 7
      %s317 = sand.u32 %s311, 127
      %s318 = sadd.s32 %s315, %s317
      %s319 = sld [smem:[#allocation4 + %s318]]
      %s320 = smul.u32 %s67, 8
      %s321 = sadd.s32 %s320, 5
      %s322 = sshra.s32 %s321, 7
      %s323 = sand.u32 %s321, 127
      %s324 = sadd.s32 %s322, %s71
      %s325 = smul.u32 %s324, 128
      %s326 = sshra.s32 %s321, 7
      %s327 = sand.u32 %s321, 127
      %s328 = sadd.s32 %s325, %s327
      %s329 = sld [smem:[#allocation4 + %s328]]
      %s330 = ssub.s32 %s59, %s71
      %s331 = ssub.s32 %s319, %s329
      %s332 = sor.u32 %s330, %s331
      %p333 = scmp.eq.s32.totalorder %s332, 0
      %s335 = sadd.s32 %s334, 1
      %s336 = scalar_select %p333, %s334, %s335
      %p339 = pneg %p333
      %p340 = scmp.eq.s32.totalorder %s52, 1
      %p341 = por %p339, %p340
      %p342 = scmp.ne.s32.totalorder %s334, %s337
      %p343 = scmp.eq.s32.totalorder %s52, 0
      %p344 = por %p342, %p343
      %p345 = scmp.ne.s32.totalorder %s334, %s337
      %p346 = scmp.eq.s32.totalorder %s57, 1
      %p347 = por %p345, %p346
      %p348 = scmp.ne.s32.totalorder %s337, %s338
      %p349 = scmp.eq.s32.totalorder %s57, 0
      %p350 = por %p348, %p349
      %p351 = scmp.ne.s32.totalorder %s337, %s338
      %p352 = scmp.eq.s32.totalorder %s58, 1
      %p353 = por %p351, %p352
      %p355 = scmp.ne.s32.totalorder %s338, %s354
      %p356 = scmp.eq.s32.totalorder %s58, 0
      %p357 = por %p355, %p356
      %s358 = smul.u32 %s60, 8
      %s359 = sadd.s32 %s358, 6
      %s360 = sshra.s32 %s359, 7
      %s361 = sand.u32 %s359, 127
      %s362 = sadd.s32 %s360, %s59
      %s363 = smul.u32 %s362, 128
      %s364 = sshra.s32 %s359, 7
      %s365 = sand.u32 %s359, 127
      %s366 = sadd.s32 %s363, %s365
      %s367 = sld [smem:[#allocation4 + %s366]]
      %s368 = smul.u32 %s67, 8
      %s369 = sadd.s32 %s368, 6
      %s370 = sshra.s32 %s369, 7
      %s371 = sand.u32 %s369, 127
      %s372 = sadd.s32 %s370, %s71
      %s373 = smul.u32 %s372, 128
      %s374 = sshra.s32 %s369, 7
      %s375 = sand.u32 %s369, 127
      %s376 = sadd.s32 %s373, %s375
      %s377 = sld [smem:[#allocation4 + %s376]]
      %s378 = ssub.s32 %s59, %s71
      %s379 = ssub.s32 %s367, %s377
      %s380 = sor.u32 %s378, %s379
      %p381 = scmp.eq.s32.totalorder %s380, 0
      %s383 = sadd.s32 %s382, 1
      %s384 = scalar_select %p381, %s382, %s383
      %p387 = pneg %p381
      %p388 = scmp.eq.s32.totalorder %s52, 1
      %p389 = por %p387, %p388
      %p390 = scmp.ne.s32.totalorder %s382, %s385
      %p391 = scmp.eq.s32.totalorder %s52, 0
      %p392 = por %p390, %p391
      %p393 = scmp.ne.s32.totalorder %s382, %s385
      %p394 = scmp.eq.s32.totalorder %s57, 1
      %p395 = por %p393, %p394
      %p396 = scmp.ne.s32.totalorder %s385, %s386
      %p397 = scmp.eq.s32.totalorder %s57, 0
      %p398 = por %p396, %p397
      %p399 = scmp.ne.s32.totalorder %s385, %s386
      %p400 = scmp.eq.s32.totalorder %s58, 1
      %p401 = por %p399, %p400
      %p403 = scmp.ne.s32.totalorder %s386, %s402
      %p404 = scmp.eq.s32.totalorder %s58, 0
      %p405 = por %p403, %p404
      %s406 = smul.u32 %s60, 8
      %s407 = sadd.s32 %s406, 7
      %s408 = sshra.s32 %s407, 7
      %s409 = sand.u32 %s407, 127
      %s410 = sadd.s32 %s408, %s59
      %s411 = smul.u32 %s410, 128
      %s412 = sshra.s32 %s407, 7
      %s413 = sand.u32 %s407, 127
      %s414 = sadd.s32 %s411, %s413
      %s415 = sld [smem:[#allocation4 + %s414]]
      %s416 = smul.u32 %s67, 8
      %s417 = sadd.s32 %s416, 7
      %s418 = sshra.s32 %s417, 7
      %s419 = sand.u32 %s417, 127
      %s420 = sadd.s32 %s418, %s71
      %s421 = smul.u32 %s420, 128
      %s422 = sshra.s32 %s417, 7
      %s423 = sand.u32 %s417, 127
      %s424 = sadd.s32 %s421, %s423
      %s425 = sld [smem:[#allocation4 + %s424]]
      %s426 = ssub.s32 %s59, %s71
      %s427 = ssub.s32 %s415, %s425
      %s428 = sor.u32 %s426, %s427
      %p429 = scmp.eq.s32.totalorder %s428, 0
      %s431 = sadd.s32 %s430, 1
      %s432 = scalar_select %p429, %s430, %s431
      %p435 = pneg %p429
      %p436 = scmp.eq.s32.totalorder %s52, 1
      %p437 = por %p435, %p436
      %p438 = scmp.ne.s32.totalorder %s430, %s433
      %p439 = scmp.eq.s32.totalorder %s52, 0
      %p440 = por %p438, %p439
      %p441 = scmp.ne.s32.totalorder %s430, %s433
      %p442 = scmp.eq.s32.totalorder %s57, 1
      %p443 = por %p441, %p442
      %p444 = scmp.ne.s32.totalorder %s433, %s434
      %p445 = scmp.eq.s32.totalorder %s57, 0
      %p446 = por %p444, %p445
      %p447 = scmp.ne.s32.totalorder %s433, %s434
      %p448 = scmp.eq.s32.totalorder %s58, 1
      %p449 = por %p447, %p448
      %p451 = scmp.ne.s32.totalorder %s434, %s450
      %p452 = scmp.eq.s32.totalorder %s58, 0
      %p453 = por %p451, %p452
      %s454 = smul.u32 %s60, 8
      %s455 = sshra.s32 %s454, 7
      %s456 = sand.u32 %s454, 127
      %s457 = sadd.s32 %s455, %s59
      %s458 = smul.u32 %s457, 128
      %s459 = sshra.s32 %s454, 7
      %s460 = sand.u32 %s454, 127
      %s461 = sadd.s32 %s458, %s460
      %s462 = sld [smem:[#allocation3 + %s461]]
      %s463 = smul.u32 %s67, 8
      %s464 = sshra.s32 %s463, 7
      %s465 = sand.u32 %s463, 127
      %s466 = sadd.s32 %s464, %s71
      %s467 = smul.u32 %s466, 128
      %s468 = sshra.s32 %s463, 7
      %s469 = sand.u32 %s463, 127
      %s470 = sadd.s32 %s467, %s469
      %s471 = sld [smem:[#allocation3 + %s470]]
      %s472 = ssub.s32 %s59, %s71
      %s473 = ssub.s32 %s462, %s471
      %s474 = sor.u32 %s472, %s473
      %p475 = scmp.eq.s32.totalorder %s474, 0
      %s477 = sadd.s32 %s476, 1
      %s478 = scalar_select %p475, %s476, %s477
      %p481 = pneg %p475
      %p482 = scmp.eq.s32.totalorder %s52, 1
      %p483 = por %p481, %p482
      %p484 = scmp.ne.s32.totalorder %s476, %s479
      %p485 = scmp.eq.s32.totalorder %s52, 0
      %p486 = por %p484, %p485
      %p487 = scmp.ne.s32.totalorder %s476, %s479
      %p488 = scmp.eq.s32.totalorder %s57, 1
      %p489 = por %p487, %p488
      %p490 = scmp.ne.s32.totalorder %s479, %s480
      %p491 = scmp.eq.s32.totalorder %s57, 0
      %p492 = por %p490, %p491
      %p493 = scmp.ne.s32.totalorder %s479, %s480
      %p494 = scmp.eq.s32.totalorder %s58, 1
      %p495 = por %p493, %p494
      %p497 = scmp.ne.s32.totalorder %s480, %s496
      %p498 = scmp.eq.s32.totalorder %s58, 0
      %p499 = por %p497, %p498
      %s500 = smul.u32 %s60, 8
      %s501 = sadd.s32 %s500, 1
      %s502 = sshra.s32 %s501, 7
      %s503 = sand.u32 %s501, 127
      %s504 = sadd.s32 %s502, %s59
      %s505 = smul.u32 %s504, 128
      %s506 = sshra.s32 %s501, 7
      %s507 = sand.u32 %s501, 127
      %s508 = sadd.s32 %s505, %s507
      %s509 = sld [smem:[#allocation3 + %s508]]
      %s510 = smul.u32 %s67, 8
      %s511 = sadd.s32 %s510, 1
      %s512 = sshra.s32 %s511, 7
      %s513 = sand.u32 %s511, 127
      %s514 = sadd.s32 %s512, %s71
      %s515 = smul.u32 %s514, 128
      %s516 = sshra.s32 %s511, 7
      %s517 = sand.u32 %s511, 127
      %s518 = sadd.s32 %s515, %s517
      %s519 = sld [smem:[#allocation3 + %s518]]
      %s520 = ssub.s32 %s59, %s71
      %s521 = ssub.s32 %s509, %s519
      %s522 = sor.u32 %s520, %s521
      %p523 = scmp.eq.s32.totalorder %s522, 0
      %s525 = sadd.s32 %s524, 1
      %s526 = scalar_select %p523, %s524, %s525
      %p529 = pneg %p523
      %p530 = scmp.eq.s32.totalorder %s52, 1
      %p531 = por %p529, %p530
      %p532 = scmp.ne.s32.totalorder %s524, %s527
      %p533 = scmp.eq.s32.totalorder %s52, 0
      %p534 = por %p532, %p533
      %p535 = scmp.ne.s32.totalorder %s524, %s527
      %p536 = scmp.eq.s32.totalorder %s57, 1
      %p537 = por %p535, %p536
      %p538 = scmp.ne.s32.totalorder %s527, %s528
      %p539 = scmp.eq.s32.totalorder %s57, 0
      %p540 = por %p538, %p539
      %p541 = scmp.ne.s32.totalorder %s527, %s528
      %p542 = scmp.eq.s32.totalorder %s58, 1
      %p543 = por %p541, %p542
      %p545 = scmp.ne.s32.totalorder %s528, %s544
      %p546 = scmp.eq.s32.totalorder %s58, 0
      %p547 = por %p545, %p546
      %s548 = smul.u32 %s60, 8
      %s549 = sadd.s32 %s548, 2
      %s550 = sshra.s32 %s549, 7
      %s551 = sand.u32 %s549, 127
      %s552 = sadd.s32 %s550, %s59
      %s553 = smul.u32 %s552, 128
      %s554 = sshra.s32 %s549, 7
      %s555 = sand.u32 %s549, 127
      %s556 = sadd.s32 %s553, %s555
      %s557 = sld [smem:[#allocation3 + %s556]]
      %s558 = smul.u32 %s67, 8
      %s559 = sadd.s32 %s558, 2
      %s560 = sshra.s32 %s559, 7
      %s561 = sand.u32 %s559, 127
      %s562 = sadd.s32 %s560, %s71
      %s563 = smul.u32 %s562, 128
      %s564 = sshra.s32 %s559, 7
      %s565 = sand.u32 %s559, 127
      %s566 = sadd.s32 %s563, %s565
      %s567 = sld [smem:[#allocation3 + %s566]]
      %s568 = ssub.s32 %s59, %s71
      %s569 = ssub.s32 %s557, %s567
      %s570 = sor.u32 %s568, %s569
      %p571 = scmp.eq.s32.totalorder %s570, 0
      %s573 = sadd.s32 %s572, 1
      %s574 = scalar_select %p571, %s572, %s573
      %p577 = pneg %p571
      %p578 = scmp.eq.s32.totalorder %s52, 1
      %p579 = por %p577, %p578
      %p580 = scmp.ne.s32.totalorder %s572, %s575
      %p581 = scmp.eq.s32.totalorder %s52, 0
      %p582 = por %p580, %p581
      %p583 = scmp.ne.s32.totalorder %s572, %s575
      %p584 = scmp.eq.s32.totalorder %s57, 1
      %p585 = por %p583, %p584
      %p586 = scmp.ne.s32.totalorder %s575, %s576
      %p587 = scmp.eq.s32.totalorder %s57, 0
      %p588 = por %p586, %p587
      %p589 = scmp.ne.s32.totalorder %s575, %s576
      %p590 = scmp.eq.s32.totalorder %s58, 1
      %p591 = por %p589, %p590
      %p593 = scmp.ne.s32.totalorder %s576, %s592
      %p594 = scmp.eq.s32.totalorder %s58, 0
      %p595 = por %p593, %p594
      %s596 = smul.u32 %s60, 8
      %s597 = sadd.s32 %s596, 3
      %s598 = sshra.s32 %s597, 7
      %s599 = sand.u32 %s597, 127
      %s600 = sadd.s32 %s598, %s59
      %s601 = smul.u32 %s600, 128
      %s602 = sshra.s32 %s597, 7
      %s603 = sand.u32 %s597, 127
      %s604 = sadd.s32 %s601, %s603
      %s605 = sld [smem:[#allocation3 + %s604]]
      %s606 = smul.u32 %s67, 8
      %s607 = sadd.s32 %s606, 3
      %s608 = sshra.s32 %s607, 7
      %s609 = sand.u32 %s607, 127
      %s610 = sadd.s32 %s608, %s71
      %s611 = smul.u32 %s610, 128
      %s612 = sshra.s32 %s607, 7
      %s613 = sand.u32 %s607, 127
      %s614 = sadd.s32 %s611, %s613
      %s615 = sld [smem:[#allocation3 + %s614]]
      %s616 = ssub.s32 %s59, %s71
      %s617 = ssub.s32 %s605, %s615
      %s618 = sor.u32 %s616, %s617
      %p619 = scmp.eq.s32.totalorder %s618, 0
      %s621 = sadd.s32 %s620, 1
      %s622 = scalar_select %p619, %s620, %s621
      %p625 = pneg %p619
      %p626 = scmp.eq.s32.totalorder %s52, 1
      %p627 = por %p625, %p626
      %p628 = scmp.ne.s32.totalorder %s620, %s623
      %p629 = scmp.eq.s32.totalorder %s52, 0
      %p630 = por %p628, %p629
      %p631 = scmp.ne.s32.totalorder %s620, %s623
      %p632 = scmp.eq.s32.totalorder %s57, 1
      %p633 = por %p631, %p632
      %p634 = scmp.ne.s32.totalorder %s623, %s624
      %p635 = scmp.eq.s32.totalorder %s57, 0
      %p636 = por %p634, %p635
      %p637 = scmp.ne.s32.totalorder %s623, %s624
      %p638 = scmp.eq.s32.totalorder %s58, 1
      %p639 = por %p637, %p638
      %p641 = scmp.ne.s32.totalorder %s624, %s640
      %p642 = scmp.eq.s32.totalorder %s58, 0
      %p643 = por %p641, %p642
      %s644 = smul.u32 %s60, 8
      %s645 = sadd.s32 %s644, 4
      %s646 = sshra.s32 %s645, 7
      %s647 = sand.u32 %s645, 127
      %s648 = sadd.s32 %s646, %s59
      %s649 = smul.u32 %s648, 128
      %s650 = sshra.s32 %s645, 7
      %s651 = sand.u32 %s645, 127
      %s652 = sadd.s32 %s649, %s651
      %s653 = sld [smem:[#allocation3 + %s652]]
      %s654 = smul.u32 %s67, 8
      %s655 = sadd.s32 %s654, 4
      %s656 = sshra.s32 %s655, 7
      %s657 = sand.u32 %s655, 127
      %s658 = sadd.s32 %s656, %s71
      %s659 = smul.u32 %s658, 128
      %s660 = sshra.s32 %s655, 7
      %s661 = sand.u32 %s655, 127
      %s662 = sadd.s32 %s659, %s661
      %s663 = sld [smem:[#allocation3 + %s662]]
      %s664 = ssub.s32 %s59, %s71
      %s665 = ssub.s32 %s653, %s663
      %s666 = sor.u32 %s664, %s665
      %p667 = scmp.eq.s32.totalorder %s666, 0
      %s669 = sadd.s32 %s668, 1
      %s670 = scalar_select %p667, %s668, %s669
      %p673 = pneg %p667
      %p674 = scmp.eq.s32.totalorder %s52, 1
      %p675 = por %p673, %p674
      %p676 = scmp.ne.s32.totalorder %s668, %s671
      %p677 = scmp.eq.s32.totalorder %s52, 0
      %p678 = por %p676, %p677
      %p679 = scmp.ne.s32.totalorder %s668, %s671
      %p680 = scmp.eq.s32.totalorder %s57, 1
      %p681 = por %p679, %p680
      %p682 = scmp.ne.s32.totalorder %s671, %s672
      %p683 = scmp.eq.s32.totalorder %s57, 0
      %p684 = por %p682, %p683
      %p685 = scmp.ne.s32.totalorder %s671, %s672
      %p686 = scmp.eq.s32.totalorder %s58, 1
      %p687 = por %p685, %p686
      %p689 = scmp.ne.s32.totalorder %s672, %s688
      %p690 = scmp.eq.s32.totalorder %s58, 0
      %p691 = por %p689, %p690
      %s692 = smul.u32 %s60, 8
      %s693 = sadd.s32 %s692, 5
      %s694 = sshra.s32 %s693, 7
      %s695 = sand.u32 %s693, 127
      %s696 = sadd.s32 %s694, %s59
      %s697 = smul.u32 %s696, 128
      %s698 = sshra.s32 %s693, 7
      %s699 = sand.u32 %s693, 127
      %s700 = sadd.s32 %s697, %s699
      %s701 = sld [smem:[#allocation3 + %s700]]
      %s702 = smul.u32 %s67, 8
      %s703 = sadd.s32 %s702, 5
      %s704 = sshra.s32 %s703, 7
      %s705 = sand.u32 %s703, 127
      %s706 = sadd.s32 %s704, %s71
      %s707 = smul.u32 %s706, 128
      %s708 = sshra.s32 %s703, 7
      %s709 = sand.u32 %s703, 127
      %s710 = sadd.s32 %s707, %s709
      %s711 = sld [smem:[#allocation3 + %s710]]
      %s712 = ssub.s32 %s59, %s71
      %s713 = ssub.s32 %s701, %s711
      %s714 = sor.u32 %s712, %s713
      %p715 = scmp.eq.s32.totalorder %s714, 0
      %s717 = sadd.s32 %s716, 1
      %s718 = scalar_select %p715, %s716, %s717
      %p721 = pneg %p715
      %p722 = scmp.eq.s32.totalorder %s52, 1
      %p723 = por %p721, %p722
      %p724 = scmp.ne.s32.totalorder %s716, %s719
      %p725 = scmp.eq.s32.totalorder %s52, 0
      %p726 = por %p724, %p725
      %p727 = scmp.ne.s32.totalorder %s716, %s719
      %p728 = scmp.eq.s32.totalorder %s57, 1
      %p729 = por %p727, %p728
      %p730 = scmp.ne.s32.totalorder %s719, %s720
      %p731 = scmp.eq.s32.totalorder %s57, 0
      %p732 = por %p730, %p731
      %p733 = scmp.ne.s32.totalorder %s719, %s720
      %p734 = scmp.eq.s32.totalorder %s58, 1
      %p735 = por %p733, %p734
      %p737 = scmp.ne.s32.totalorder %s720, %s736
      %p738 = scmp.eq.s32.totalorder %s58, 0
      %p739 = por %p737, %p738
      %s740 = smul.u32 %s60, 8
      %s741 = sadd.s32 %s740, 6
      %s742 = sshra.s32 %s741, 7
      %s743 = sand.u32 %s741, 127
      %s744 = sadd.s32 %s742, %s59
      %s745 = smul.u32 %s744, 128
      %s746 = sshra.s32 %s741, 7
      %s747 = sand.u32 %s741, 127
      %s748 = sadd.s32 %s745, %s747
      %s749 = sld [smem:[#allocation3 + %s748]]
      %s750 = smul.u32 %s67, 8
      %s751 = sadd.s32 %s750, 6
      %s752 = sshra.s32 %s751, 7
      %s753 = sand.u32 %s751, 127
      %s754 = sadd.s32 %s752, %s71
      %s755 = smul.u32 %s754, 128
      %s756 = sshra.s32 %s751, 7
      %s757 = sand.u32 %s751, 127
      %s758 = sadd.s32 %s755, %s757
      %s759 = sld [smem:[#allocation3 + %s758]]
      %s760 = ssub.s32 %s59, %s71
      %s761 = ssub.s32 %s749, %s759
      %s762 = sor.u32 %s760, %s761
      %p763 = scmp.eq.s32.totalorder %s762, 0
      %s765 = sadd.s32 %s764, 1
      %s766 = scalar_select %p763, %s764, %s765
      %p769 = pneg %p763
      %p770 = scmp.eq.s32.totalorder %s52, 1
      %p771 = por %p769, %p770
      %p772 = scmp.ne.s32.totalorder %s764, %s767
      %p773 = scmp.eq.s32.totalorder %s52, 0
      %p774 = por %p772, %p773
      %p775 = scmp.ne.s32.totalorder %s764, %s767
      %p776 = scmp.eq.s32.totalorder %s57, 1
      %p777 = por %p775, %p776
      %p778 = scmp.ne.s32.totalorder %s767, %s768
      %p779 = scmp.eq.s32.totalorder %s57, 0
      %p780 = por %p778, %p779
      %p781 = scmp.ne.s32.totalorder %s767, %s768
      %p782 = scmp.eq.s32.totalorder %s58, 1
      %p783 = por %p781, %p782
      %p785 = scmp.ne.s32.totalorder %s768, %s784
      %p786 = scmp.eq.s32.totalorder %s58, 0
      %p787 = por %p785, %p786
      %s788 = smul.u32 %s60, 8
      %s789 = sadd.s32 %s788, 7
      %s790 = sshra.s32 %s789, 7
      %s791 = sand.u32 %s789, 127
      %s792 = sadd.s32 %s790, %s59
      %s793 = smul.u32 %s792, 128
      %s794 = sshra.s32 %s789, 7
      %s795 = sand.u32 %s789, 127
      %s796 = sadd.s32 %s793, %s795
      %s797 = sld [smem:[#allocation3 + %s796]]
      %s798 = smul.u32 %s67, 8
      %s799 = sadd.s32 %s798, 7
      %s800 = sshra.s32 %s799, 7
      %s801 = sand.u32 %s799, 127
      %s802 = sadd.s32 %s800, %s71
      %s803 = smul.u32 %s802, 128
      %s804 = sshra.s32 %s799, 7
      %s805 = sand.u32 %s799, 127
      %s806 = sadd.s32 %s803, %s805
      %s807 = sld [smem:[#allocation3 + %s806]]
      %s808 = ssub.s32 %s59, %s71
      %s809 = ssub.s32 %s797, %s807
      %s810 = sor.u32 %s808, %s809
      %p811 = scmp.eq.s32.totalorder %s810, 0
      %s813 = sadd.s32 %s812, 1
      %s814 = scalar_select %p811, %s812, %s813
      %p817 = pneg %p811
      %p818 = scmp.eq.s32.totalorder %s52, 1
      %p819 = por %p817, %p818
      %p820 = scmp.ne.s32.totalorder %s812, %s815
      %p821 = scmp.eq.s32.totalorder %s52, 0
      %p822 = por %p820, %p821
      %p823 = scmp.ne.s32.totalorder %s812, %s815
      %p824 = scmp.eq.s32.totalorder %s57, 1
      %p825 = por %p823, %p824
      %p826 = scmp.ne.s32.totalorder %s815, %s816
      %p827 = scmp.eq.s32.totalorder %s57, 0
      %p828 = por %p826, %p827
      %p829 = scmp.ne.s32.totalorder %s815, %s816
      %p830 = scmp.eq.s32.totalorder %s58, 1
      %p831 = por %p829, %p830
      %p833 = scmp.ne.s32.totalorder %s816, %s832
      %p834 = scmp.eq.s32.totalorder %s58, 0
      %p835 = por %p833, %p834
      %s836 = ssub.s32 %s59, %s71
      %s837 = ssub.s32 %s60, %s67
      %s838 = sor.u32 %s836, %s837
      %p839 = scmp.eq.s32.totalorder %s838, 0
      %s841 = sadd.s32 %s840, 1
      %s842 = scalar_select %p839, %s840, %s841
      %p845 = pneg %p839
      %p846 = scmp.eq.s32.totalorder %s52, 1
      %p847 = por %p845, %p846
      %p848 = scmp.ne.s32.totalorder %s840, %s843
      %p849 = scmp.eq.s32.totalorder %s52, 0
      %p850 = por %p848, %p849
      %p851 = scmp.ne.s32.totalorder %s840, %s843
      %p852 = scmp.eq.s32.totalorder %s57, 1
      %p853 = por %p851, %p852
      %p854 = scmp.ne.s32.totalorder %s843, %s844
      %p855 = scmp.eq.s32.totalorder %s57, 0
      %p856 = por %p854, %p855
      %p857 = scmp.ne.s32.totalorder %s843, %s844
      %p858 = scmp.eq.s32.totalorder %s58, 1
      %p859 = por %p857, %p858
      %p861 = scmp.ne.s32.totalorder %s844, %s860
      %p862 = scmp.eq.s32.totalorder %s58, 0
      %p863 = por %p861, %p862
      %s864 = ssub.s32 %s59, %s71
      %s865 = ssub.s32 %s60, %s67
      %s866 = sor.u32 %s864, %s865
      %p867 = scmp.eq.s32.totalorder %s866, 0
      %s869 = sadd.s32 %s868, 1
      %s870 = scalar_select %p867, %s868, %s869
      %p873 = pneg %p867
      %p874 = scmp.eq.s32.totalorder %s52, 1
      %p875 = por %p873, %p874
      %p876 = scmp.ne.s32.totalorder %s868, %s871
      %p877 = scmp.eq.s32.totalorder %s52, 0
      %p878 = por %p876, %p877
      %p879 = scmp.ne.s32.totalorder %s868, %s871
      %p880 = scmp.eq.s32.totalorder %s57, 1
      %p881 = por %p879, %p880
      %p882 = scmp.ne.s32.totalorder %s871, %s872
      %p883 = scmp.eq.s32.totalorder %s57, 0
      %p884 = por %p882, %p883
      %p885 = scmp.ne.s32.totalorder %s871, %s872
      %p886 = scmp.eq.s32.totalorder %s58, 1
      %p887 = por %p885, %p886
      %p889 = scmp.ne.s32.totalorder %s872, %s888
      %p890 = scmp.eq.s32.totalorder %s58, 0
      %p891 = por %p889, %p890
      %p892 = scmp.le.s32.totalorder 1, %s52
      %p893 = scmp.lt.s32.totalorder %s52, 3
      %p894 = pnand %p892, %p893
      %p895 = pneg %p894
      // Predicated region
      $region9: #{tpu_custom_call.1} parent=5 // pred_check
        _
      $region10: #{tpu_custom_call.1} parent=5 // pred_check_branch
        %897 = sbr.rel (%p894) target = $region12
      $region11: #{tpu_custom_call.1} parent=5 // pred_region
        %s898 = ssub.s32 %s52, 1
      $region12: #{tpu_custom_call.1} parent=5 // pred_fallthru
        _
      %p899 = scmp.lt.s32.totalorder %s52, 2
      // Predicated region
      $region13: #{tpu_custom_call.1} parent=5 // pred_check
        %p900 = pneg %p899
      $region14: #{tpu_custom_call.1} parent=5 // pred_check_branch
        %902 = sbr.rel (%p900) target = $region16
      $region15: #{tpu_custom_call.1} parent=5 // pred_region
        // Predicated region
        $region17: #{tpu_custom_call.1} parent=15 // pred_check
          %p903 = pneg %p104
        $region18: #{tpu_custom_call.1} parent=15 // pred_check_branch
          %905 = sbr.rel (%p903) target = $region20
        $region19: #{tpu_custom_call.1} parent=15 // pred_region
          %s906 = smul.u32 %s60, 8
          %s907 = sshra.s32 %s906, 7
          %s908 = sand.u32 %s906, 127
          %s909 = sadd.s32 %s907, %s59
          %s910 = smul.u32 %s909, 128
          %s911 = sshra.s32 %s906, 7
          %s912 = sand.u32 %s906, 127
          %s913 = sadd.s32 %s910, %s912
          %s914 = sld [smem:[#allocation4 + %s913]]
          %p915 = scmp.lt.s32.totalorder %s59, 1
          %s916 = scalar_select %p915, %s59, 1
          %p917 = scmp.lt.s32.totalorder %s914, 7
          %s918 = scalar_select %p917, %s914, 7
          %s919 = smul.addr %s916, 8
          %s920 = sadd.s32 %s918, %s919
          %s921 = scalar_lea.vmem %s2, %s920
          %s922 = smul.u32 %s60, 8
          %s923 = sshra.s32 %s922, 7
          %s924 = sand.u32 %s922, 127
          %s925 = sadd.s32 %s923, %s59
          %s926 = smul.u32 %s925, 128
          %s927 = sshra.s32 %s922, 7
          %s928 = sand.u32 %s922, 127
          %s929 = sadd.s32 %s926, %s928
          %s930 = sld [smem:[#allocation4 + %s929]]
        $region20: #{tpu_custom_call.1} parent=15 // pred_fallthru
          _
        // Predicated region
        $region21: #{tpu_custom_call.1} parent=15 // pred_check
          %p931 = pneg %p152
        $region22: #{tpu_custom_call.1} parent=15 // pred_check_branch
          %933 = sbr.rel (%p931) target = $region24
        $region23: #{tpu_custom_call.1} parent=15 // pred_region
          %s934 = smul.u32 %s60, 8
          %s935 = sadd.s32 %s934, 1
          %s936 = sshra.s32 %s935, 7
          %s937 = sand.u32 %s935, 127
          %s938 = sadd.s32 %s936, %s59
          %s939 = smul.u32 %s938, 128
          %s940 = sshra.s32 %s935, 7
          %s941 = sand.u32 %s935, 127
          %s942 = sadd.s32 %s939, %s941
          %s943 = sld [smem:[#allocation4 + %s942]]
          %p944 = scmp.lt.s32.totalorder %s59, 1
          %s945 = scalar_select %p944, %s59, 1
          %p946 = scmp.lt.s32.totalorder %s943, 7
          %s947 = scalar_select %p946, %s943, 7
          %s948 = smul.addr %s945, 8
          %s949 = sadd.s32 %s947, %s948
          %s950 = scalar_lea.vmem %s3, %s949
          %s951 = smul.u32 %s60, 8
          %s952 = sadd.s32 %s951, 1
          %s953 = sshra.s32 %s952, 7
          %s954 = sand.u32 %s952, 127
          %s955 = sadd.s32 %s953, %s59
          %s956 = smul.u32 %s955, 128
          %s957 = sshra.s32 %s952, 7
          %s958 = sand.u32 %s952, 127
          %s959 = sadd.s32 %s956, %s958
          %s960 = sld [smem:[#allocation4 + %s959]]
        $region24: #{tpu_custom_call.1} parent=15 // pred_fallthru
          _
        // Predicated region
        $region25: #{tpu_custom_call.1} parent=15 // pred_check
          %p961 = pneg %p200
        $region26: #{tpu_custom_call.1} parent=15 // pred_check_branch
          %963 = sbr.rel (%p961) target = $region28
        $region27: #{tpu_custom_call.1} parent=15 // pred_region
          %s964 = smul.u32 %s60, 8
          %s965 = sadd.s32 %s964, 2
          %s966 = sshra.s32 %s965, 7
          %s967 = sand.u32 %s965, 127
          %s968 = sadd.s32 %s966, %s59
          %s969 = smul.u32 %s968, 128
          %s970 = sshra.s32 %s965, 7
          %s971 = sand.u32 %s965, 127
          %s972 = sadd.s32 %s969, %s971
          %s973 = sld [smem:[#allocation4 + %s972]]
          %p974 = scmp.lt.s32.totalorder %s59, 1
          %s975 = scalar_select %p974, %s59, 1
          %p976 = scmp.lt.s32.totalorder %s973, 7
          %s977 = scalar_select %p976, %s973, 7
          %s978 = smul.addr %s975, 8
          %s979 = sadd.s32 %s977, %s978
          %s980 = scalar_lea.vmem %s4, %s979
          %s981 = smul.u32 %s60, 8
          %s982 = sadd.s32 %s981, 2
          %s983 = sshra.s32 %s982, 7
          %s984 = sand.u32 %s982, 127
          %s985 = sadd.s32 %s983, %s59
          %s986 = smul.u32 %s985, 128
          %s987 = sshra.s32 %s982, 7
          %s988 = sand.u32 %s982, 127
          %s989 = sadd.s32 %s986, %s988
          %s990 = sld [smem:[#allocation4 + %s989]]
        $region28: #{tpu_custom_call.1} parent=15 // pred_fallthru
          _
        // Predicated region
        $region29: #{tpu_custom_call.1} parent=15 // pred_check
          %p991 = pneg %p248
        $region30: #{tpu_custom_call.1} parent=15 // pred_check_branch
          %993 = sbr.rel (%p991) target = $region32
        $region31: #{tpu_custom_call.1} parent=15 // pred_region
          %s994 = smul.u32 %s60, 8
          %s995 = sadd.s32 %s994, 3
          %s996 = sshra.s32 %s995, 7
          %s997 = sand.u32 %s995, 127
          %s998 = sadd.s32 %s996, %s59
          %s999 = smul.u32 %s998, 128
          %s1000 = sshra.s32 %s995, 7
          %s1001 = sand.u32 %s995, 127
          %s1002 = sadd.s32 %s999, %s1001
          %s1003 = sld [smem:[#allocation4 + %s1002]]
          %p1004 = scmp.lt.s32.totalorder %s59, 1
          %s1005 = scalar_select %p1004, %s59, 1
          %p1006 = scmp.lt.s32.totalorder %s1003, 7
          %s1007 = scalar_select %p1006, %s1003, 7
          %s1008 = smul.addr %s1005, 8
          %s1009 = sadd.s32 %s1007, %s1008
          %s1010 = scalar_lea.vmem %s5, %s1009
          %s1011 = smul.u32 %s60, 8
          %s1012 = sadd.s32 %s1011, 3
          %s1013 = sshra.s32 %s1012, 7
          %s1014 = sand.u32 %s1012, 127
          %s1015 = sadd.s32 %s1013, %s59
          %s1016 = smul.u32 %s1015, 128
          %s1017 = sshra.s32 %s1012, 7
          %s1018 = sand.u32 %s1012, 127
          %s1019 = sadd.s32 %s1016, %s1018
          %s1020 = sld [smem:[#allocation4 + %s1019]]
        $region32: #{tpu_custom_call.1} parent=15 // pred_fallthru
          _
        // Predicated region
        $region33: #{tpu_custom_call.1} parent=15 // pred_check
          %p1021 = pneg %p296
        $region34: #{tpu_custom_call.1} parent=15 // pred_check_branch
          %1023 = sbr.rel (%p1021) target = $region36
        $region35: #{tpu_custom_call.1} parent=15 // pred_region
          %s1024 = sand.u32 %s286, 1
          %s1025 = scalar_lea.sflag [#allocation6], %s1024
          %s1026 = sand.u32 %s286, 1
          %s1027 = scalar_lea.vmem [#allocation5], %s1026
          %s1028 = smul.u32 %s60, 8
          %s1029 = sadd.s32 %s1028, 4
          %s1030 = sshra.s32 %s1029, 7
          %s1031 = sand.u32 %s1029, 127
          %s1032 = sadd.s32 %s1030, %s59
          %s1033 = smul.u32 %s1032, 128
          %s1034 = sshra.s32 %s1029, 7
          %s1035 = sand.u32 %s1029, 127
          %s1036 = sadd.s32 %s1033, %s1035
          %s1037 = sld [smem:[#allocation4 + %s1036]]
          %s1039 = ssub.s32 16, 16
          %1040 = vsyncadd %s1025, %s1039
          %s1041 = smul.addr %s59, 8
          %s1042 = sadd.s32 %s1037, %s1041
          %s1043 = smul.addr %s1042, 16
          %s1044 = scalar_lea.hbm %s6, %s1043
          %s1046 = sshll.u32 %s1027, 4
          %s1047 = int_to_ptr.vmem [resolvable:$true] %s1046
          %1049 = dma.hbm_to_vmem [thread:$0]  %s1044, 16, %s1047, %s1025
        $region36: #{tpu_custom_call.1} parent=15 // pred_fallthru
          _
        // Predicated region
        $region37: #{tpu_custom_call.1} parent=15 // pred_check
          %p1050 = pneg %p344
        $region38: #{tpu_custom_call.1} parent=15 // pred_check_branch
          %1052 = sbr.rel (%p1050) target = $region40
        $region39: #{tpu_custom_call.1} parent=15 // pred_region
          %s1053 = sand.u32 %s52, 1
          %s1054 = scalar_lea.sflag [#allocation9], %s1053
          %s1055 = sand.u32 %s334, 1
          %s1056 = scalar_lea.vmem [#allocation8], %s1055
          %s1057 = smul.u32 %s60, 8
          %s1058 = sadd.s32 %s1057, 5
          %s1059 = sshra.s32 %s1058, 7
          %s1060 = sand.u32 %s1058, 127
          %s1061 = sadd.s32 %s1059, %s59
          %s1062 = smul.u32 %s1061, 128
          %s1063 = sshra.s32 %s1058, 7
          %s1064 = sand.u32 %s1058, 127
          %s1065 = sadd.s32 %s1062, %s1064
          %s1066 = sld [smem:[#allocation4 + %s1065]]
          %s1068 = ssub.s32 16, 16
          %1069 = vsyncadd %s1054, %s1068
          %s1070 = smul.addr %s59, 8
          %s1071 = sadd.s32 %s1066, %s1070
          %s1072 = smul.addr %s1071, 16
          %s1073 = scalar_lea.hbm %s7, %s1072
          %s1075 = sshll.u32 %s1056, 4
          %s1076 = int_to_ptr.vmem [resolvable:$true] %s1075
          %1078 = dma.hbm_to_vmem [thread:$0]  %s1073, 16, %s1076, %s1054
        $region40: #{tpu_custom_call.1} parent=15 // pred_fallthru
          _
        // Predicated region
        $region41: #{tpu_custom_call.1} parent=15 // pred_check
          %p1079 = pneg %p392
        $region42: #{tpu_custom_call.1} parent=15 // pred_check_branch
          %1081 = sbr.rel (%p1079) target = $region44
        $region43: #{tpu_custom_call.1} parent=15 // pred_region
          %s1082 = sand.u32 %s52, 1
          %s1083 = scalar_lea.sflag [#allocation9], %s1082
          %s1084 = sand.u32 %s382, 1
          %s1085 = scalar_lea.vmem [#allocation10], %s1084
          %s1086 = smul.u32 %s60, 8
          %s1087 = sadd.s32 %s1086, 6
          %s1088 = sshra.s32 %s1087, 7
          %s1089 = sand.u32 %s1087, 127
          %s1090 = sadd.s32 %s1088, %s59
          %s1091 = smul.u32 %s1090, 128
          %s1092 = sshra.s32 %s1087, 7
          %s1093 = sand.u32 %s1087, 127
          %s1094 = sadd.s32 %s1091, %s1093
          %s1095 = sld [smem:[#allocation4 + %s1094]]
          %s1097 = ssub.s32 16, 16
          %1098 = vsyncadd %s1083, %s1097
          %s1099 = smul.addr %s59, 8
          %s1100 = sadd.s32 %s1095, %s1099
          %s1101 = smul.addr %s1100, 16
          %s1102 = scalar_lea.hbm %s8, %s1101
          %s1104 = sshll.u32 %s1085, 4
          %s1105 = int_to_ptr.vmem [resolvable:$true] %s1104
          %1107 = dma.hbm_to_vmem [thread:$0]  %s1102, 16, %s1105, %s1083
        $region44: #{tpu_custom_call.1} parent=15 // pred_fallthru
          _
        // Predicated region
        $region45: #{tpu_custom_call.1} parent=15 // pred_check
          %p1108 = pneg %p440
        $region46: #{tpu_custom_call.1} parent=15 // pred_check_branch
          %1110 = sbr.rel (%p1108) target = $region48
        $region47: #{tpu_custom_call.1} parent=15 // pred_region
          %s1111 = sand.u32 %s52, 1
          %s1112 = scalar_lea.sflag [#allocation12], %s1111
          %s1113 = sand.u32 %s430, 1
          %s1114 = scalar_lea.vmem [#allocation11], %s1113
          %s1115 = smul.u32 %s60, 8
          %s1116 = sadd.s32 %s1115, 7
          %s1117 = sshra.s32 %s1116, 7
          %s1118 = sand.u32 %s1116, 127
          %s1119 = sadd.s32 %s1117, %s59
          %s1120 = smul.u32 %s1119, 128
          %s1121 = sshra.s32 %s1116, 7
          %s1122 = sand.u32 %s1116, 127
          %s1123 = sadd.s32 %s1120, %s1122
          %s1124 = sld [smem:[#allocation4 + %s1123]]
          %s1126 = ssub.s32 16, 16
          %1127 = vsyncadd %s1112, %s1126
          %s1128 = smul.addr %s59, 8
          %s1129 = sadd.s32 %s1124, %s1128
          %s1130 = smul.addr %s1129, 16
          %s1131 = scalar_lea.hbm %s9, %s1130
          %s1133 = sshll.u32 %s1114, 4
          %s1134 = int_to_ptr.vmem [resolvable:$true] %s1133
          %1136 = dma.hbm_to_vmem [thread:$0]  %s1131, 16, %s1134, %s1112
        $region48: #{tpu_custom_call.1} parent=15 // pred_fallthru
          _
        // Predicated region
        $region49: #{tpu_custom_call.1} parent=15 // pred_check
          %p1137 = pneg %p486
        $region50: #{tpu_custom_call.1} parent=15 // pred_check_branch
          %1139 = sbr.rel (%p1137) target = $region52
        $region51: #{tpu_custom_call.1} parent=15 // pred_region
          %s1140 = smul.u32 %s60, 8
          %s1141 = sshra.s32 %s1140, 7
          %s1142 = sand.u32 %s1140, 127
          %s1143 = sadd.s32 %s1141, %s59
          %s1144 = smul.u32 %s1143, 128
          %s1145 = sshra.s32 %s1140, 7
          %s1146 = sand.u32 %s1140, 127
          %s1147 = sadd.s32 %s1144, %s1146
          %s1148 = sld [smem:[#allocation3 + %s1147]]
          %p1149 = scmp.lt.s32.totalorder %s59, 1
          %s1150 = scalar_select %p1149, %s59, 1
          %p1151 = scmp.lt.s32.totalorder %s1148, 5
          %s1152 = scalar_select %p1151, %s1148, 5
          %s1153 = smul.addr %s1150, 6
          %s1154 = sadd.s32 %s1152, %s1153
          %s1155 = smul.addr %s1154, 8
          %s1156 = scalar_lea.vmem %s10, %s1155
          %s1157 = smul.u32 %s60, 8
          %s1158 = sshra.s32 %s1157, 7
          %s1159 = sand.u32 %s1157, 127
          %s1160 = sadd.s32 %s1158, %s59
          %s1161 = smul.u32 %s1160, 128
          %s1162 = sshra.s32 %s1157, 7
          %s1163 = sand.u32 %s1157, 127
          %s1164 = sadd.s32 %s1161, %s1163
          %s1165 = sld [smem:[#allocation3 + %s1164]]
        $region52: #{tpu_custom_call.1} parent=15 // pred_fallthru
          _
        // Predicated region
        $region53: #{tpu_custom_call.1} parent=15 // pred_check
          %p1166 = pneg %p534
        $region54: #{tpu_custom_call.1} parent=15 // pred_check_branch
          %1168 = sbr.rel (%p1166) target = $region56
        $region55: #{tpu_custom_call.1} parent=15 // pred_region
          %s1169 = sand.u32 %s52, 1
          %s1170 = scalar_lea.sflag [#allocation12], %s1169
          %s1171 = sand.u32 %s524, 1
          %s1172 = smul.addr %s1171, 8
          %s1173 = scalar_lea.vmem [#allocation13], %s1172
          %s1174 = smul.u32 %s60, 8
          %s1175 = sadd.s32 %s1174, 1
          %s1176 = sshra.s32 %s1175, 7
          %s1177 = sand.u32 %s1175, 127
          %s1178 = sadd.s32 %s1176, %s59
          %s1179 = smul.u32 %s1178, 128
          %s1180 = sshra.s32 %s1175, 7
          %s1181 = sand.u32 %s1175, 127
          %s1182 = sadd.s32 %s1179, %s1181
          %s1183 = sld [smem:[#allocation3 + %s1182]]
          %s1185 = ssub.s32 128, 128
          %1186 = vsyncadd %s1170, %s1185
          %s1187 = smul.addr %s59, 6
          %s1188 = sadd.s32 %s1183, %s1187
          %s1189 = smul.addr %s1188, 128
          %s1190 = scalar_lea.hbm %s11, %s1189
          %s1192 = sshll.u32 %s1173, 4
          %s1193 = int_to_ptr.vmem [resolvable:$true] %s1192
          %1195 = dma.hbm_to_vmem [thread:$0]  %s1190, 128, %s1193, %s1170
        $region56: #{tpu_custom_call.1} parent=15 // pred_fallthru
          _
        // Predicated region
        $region57: #{tpu_custom_call.1} parent=15 // pred_check
          %p1196 = pneg %p582
        $region58: #{tpu_custom_call.1} parent=15 // pred_check_branch
          %1198 = sbr.rel (%p1196) target = $region60
        $region59: #{tpu_custom_call.1} parent=15 // pred_region
          %s1199 = sand.u32 %s52, 1
          %s1200 = scalar_lea.sflag [#allocation15], %s1199
          %s1201 = sand.u32 %s572, 1
          %s1202 = smul.addr %s1201, 8
          %s1203 = scalar_lea.vmem [#allocation14], %s1202
          %s1204 = smul.u32 %s60, 8
          %s1205 = sadd.s32 %s1204, 2
          %s1206 = sshra.s32 %s1205, 7
          %s1207 = sand.u32 %s1205, 127
          %s1208 = sadd.s32 %s1206, %s59
          %s1209 = smul.u32 %s1208, 128
          %s1210 = sshra.s32 %s1205, 7
          %s1211 = sand.u32 %s1205, 127
          %s1212 = sadd.s32 %s1209, %s1211
          %s1213 = sld [smem:[#allocation3 + %s1212]]
          %s1215 = ssub.s32 128, 128
          %1216 = vsyncadd %s1200, %s1215
          %s1217 = smul.addr %s59, 6
          %s1218 = sadd.s32 %s1213, %s1217
          %s1219 = smul.addr %s1218, 128
          %s1220 = scalar_lea.hbm %s12, %s1219
          %s1222 = sshll.u32 %s1203, 4
          %s1223 = int_to_ptr.vmem [resolvable:$true] %s1222
          %1225 = dma.hbm_to_vmem [thread:$0]  %s1220, 128, %s1223, %s1200
        $region60: #{tpu_custom_call.1} parent=15 // pred_fallthru
          _
        // Predicated region
        $region61: #{tpu_custom_call.1} parent=15 // pred_check
          %p1226 = pneg %p630
        $region62: #{tpu_custom_call.1} parent=15 // pred_check_branch
          %1228 = sbr.rel (%p1226) target = $region64
        $region63: #{tpu_custom_call.1} parent=15 // pred_region
          %s1229 = sand.u32 %s52, 1
          %s1230 = scalar_lea.sflag [#allocation15], %s1229
          %s1231 = sand.u32 %s620, 1
          %s1232 = smul.addr %s1231, 8
          %s1233 = scalar_lea.vmem [#allocation16], %s1232
          %s1234 = smul.u32 %s60, 8
          %s1235 = sadd.s32 %s1234, 3
          %s1236 = sshra.s32 %s1235, 7
          %s1237 = sand.u32 %s1235, 127
          %s1238 = sadd.s32 %s1236, %s59
          %s1239 = smul.u32 %s1238, 128
          %s1240 = sshra.s32 %s1235, 7
          %s1241 = sand.u32 %s1235, 127
          %s1242 = sadd.s32 %s1239, %s1241
          %s1243 = sld [smem:[#allocation3 + %s1242]]
          %s1245 = ssub.s32 128, 128
          %1246 = vsyncadd %s1230, %s1245
          %s1247 = smul.addr %s59, 6
          %s1248 = sadd.s32 %s1243, %s1247
          %s1249 = smul.addr %s1248, 128
          %s1250 = scalar_lea.hbm %s13, %s1249
          %s1252 = sshll.u32 %s1233, 4
          %s1253 = int_to_ptr.vmem [resolvable:$true] %s1252
          %1255 = dma.hbm_to_vmem [thread:$0]  %s1250, 128, %s1253, %s1230
        $region64: #{tpu_custom_call.1} parent=15 // pred_fallthru
          _
        // Predicated region
        $region65: #{tpu_custom_call.1} parent=15 // pred_check
          %p1256 = pneg %p678
        $region66: #{tpu_custom_call.1} parent=15 // pred_check_branch
          %1258 = sbr.rel (%p1256) target = $region68
        $region67: #{tpu_custom_call.1} parent=15 // pred_region
          %s1259 = sand.u32 %s52, 1
          %s1260 = scalar_lea.sflag [#allocation18], %s1259
          %s1261 = sand.u32 %s668, 1
          %s1262 = smul.addr %s1261, 8
          %s1263 = scalar_lea.vmem [#allocation17], %s1262
          %s1264 = smul.u32 %s60, 8
          %s1265 = sadd.s32 %s1264, 4
          %s1266 = sshra.s32 %s1265, 7
          %s1267 = sand.u32 %s1265, 127
          %s1268 = sadd.s32 %s1266, %s59
          %s1269 = smul.u32 %s1268, 128
          %s1270 = sshra.s32 %s1265, 7
          %s1271 = sand.u32 %s1265, 127
          %s1272 = sadd.s32 %s1269, %s1271
          %s1273 = sld [smem:[#allocation3 + %s1272]]
          %s1275 = ssub.s32 128, 128
          %1276 = vsyncadd %s1260, %s1275
          %s1277 = smul.addr %s59, 6
          %s1278 = sadd.s32 %s1273, %s1277
          %s1279 = smul.addr %s1278, 128
          %s1280 = scalar_lea.hbm %s14, %s1279
          %s1282 = sshll.u32 %s1263, 4
          %s1283 = int_to_ptr.vmem [resolvable:$true] %s1282
          %1285 = dma.hbm_to_vmem [thread:$0]  %s1280, 128, %s1283, %s1260
        $region68: #{tpu_custom_call.1} parent=15 // pred_fallthru
          _
        // Predicated region
        $region69: #{tpu_custom_call.1} parent=15 // pred_check
          %p1286 = pneg %p726
        $region70: #{tpu_custom_call.1} parent=15 // pred_check_branch
          %1288 = sbr.rel (%p1286) target = $region72
        $region71: #{tpu_custom_call.1} parent=15 // pred_region
          %s1289 = sand.u32 %s52, 1
          %s1290 = scalar_lea.sflag [#allocation18], %s1289
          %s1291 = sand.u32 %s716, 1
          %s1292 = smul.addr %s1291, 8
          %s1293 = scalar_lea.vmem [#allocation19], %s1292
          %s1294 = smul.u32 %s60, 8
          %s1295 = sadd.s32 %s1294, 5
          %s1296 = sshra.s32 %s1295, 7
          %s1297 = sand.u32 %s1295, 127
          %s1298 = sadd.s32 %s1296, %s59
          %s1299 = smul.u32 %s1298, 128
          %s1300 = sshra.s32 %s1295, 7
          %s1301 = sand.u32 %s1295, 127
          %s1302 = sadd.s32 %s1299, %s1301
          %s1303 = sld [smem:[#allocation3 + %s1302]]
          %s1305 = ssub.s32 128, 128
          %1306 = vsyncadd %s1290, %s1305
          %s1307 = smul.addr %s59, 6
          %s1308 = sadd.s32 %s1303, %s1307
          %s1309 = smul.addr %s1308, 128
          %s1310 = scalar_lea.hbm %s15, %s1309
          %s1312 = sshll.u32 %s1293, 4
          %s1313 = int_to_ptr.vmem [resolvable:$true] %s1312
          %1315 = dma.hbm_to_vmem [thread:$0]  %s1310, 128, %s1313, %s1290
        $region72: #{tpu_custom_call.1} parent=15 // pred_fallthru
          _
        // Predicated region
        $region73: #{tpu_custom_call.1} parent=15 // pred_check
          %p1316 = pneg %p774
        $region74: #{tpu_custom_call.1} parent=15 // pred_check_branch
          %1318 = sbr.rel (%p1316) target = $region76
        $region75: #{tpu_custom_call.1} parent=15 // pred_region
          %s1319 = sand.u32 %s52, 1
          %s1320 = scalar_lea.sflag [#allocation21], %s1319
          %s1321 = sand.u32 %s764, 1
          %s1322 = smul.addr %s1321, 8
          %s1323 = scalar_lea.vmem [#allocation20], %s1322
          %s1324 = smul.u32 %s60, 8
          %s1325 = sadd.s32 %s1324, 6
          %s1326 = sshra.s32 %s1325, 7
          %s1327 = sand.u32 %s1325, 127
          %s1328 = sadd.s32 %s1326, %s59
          %s1329 = smul.u32 %s1328, 128
          %s1330 = sshra.s32 %s1325, 7
          %s1331 = sand.u32 %s1325, 127
          %s1332 = sadd.s32 %s1329, %s1331
          %s1333 = sld [smem:[#allocation3 + %s1332]]
          %s1335 = ssub.s32 128, 128
          %1336 = vsyncadd %s1320, %s1335
          %s1337 = smul.addr %s59, 6
          %s1338 = sadd.s32 %s1333, %s1337
          %s1339 = smul.addr %s1338, 128
          %s1340 = scalar_lea.hbm %s16, %s1339
          %s1342 = sshll.u32 %s1323, 4
          %s1343 = int_to_ptr.vmem [resolvable:$true] %s1342
          %1345 = dma.hbm_to_vmem [thread:$0]  %s1340, 128, %s1343, %s1320
        $region76: #{tpu_custom_call.1} parent=15 // pred_fallthru
          _
        // Predicated region
        $region77: #{tpu_custom_call.1} parent=15 // pred_check
          %p1346 = pneg %p822
        $region78: #{tpu_custom_call.1} parent=15 // pred_check_branch
          %1348 = sbr.rel (%p1346) target = $region80
        $region79: #{tpu_custom_call.1} parent=15 // pred_region
          %s1349 = sand.u32 %s52, 1
          %s1350 = scalar_lea.sflag [#allocation21], %s1349
          %s1351 = sand.u32 %s812, 1
          %s1352 = smul.addr %s1351, 8
          %s1353 = scalar_lea.vmem [#allocation22], %s1352
          %s1354 = smul.u32 %s60, 8
          %s1355 = sadd.s32 %s1354, 7
          %s1356 = sshra.s32 %s1355, 7
          %s1357 = sand.u32 %s1355, 127
          %s1358 = sadd.s32 %s1356, %s59
          %s1359 = smul.u32 %s1358, 128
          %s1360 = sshra.s32 %s1355, 7
          %s1361 = sand.u32 %s1355, 127
          %s1362 = sadd.s32 %s1359, %s1361
          %s1363 = sld [smem:[#allocation3 + %s1362]]
          %s1365 = ssub.s32 128, 128
          %1366 = vsyncadd %s1350, %s1365
          %s1367 = smul.addr %s59, 6
          %s1368 = sadd.s32 %s1363, %s1367
          %s1369 = smul.addr %s1368, 128
          %s1370 = scalar_lea.hbm %s17, %s1369
          %s1372 = sshll.u32 %s1353, 4
          %s1373 = int_to_ptr.vmem [resolvable:$true] %s1372
          %1375 = dma.hbm_to_vmem [thread:$0]  %s1370, 128, %s1373, %s1350
        $region80: #{tpu_custom_call.1} parent=15 // pred_fallthru
          _
        // Predicated region
        $region81: #{tpu_custom_call.1} parent=15 // pred_check
          %p1376 = pneg %p850
        $region82: #{tpu_custom_call.1} parent=15 // pred_check_branch
          %1378 = sbr.rel (%p1376) target = $region84
        $region83: #{tpu_custom_call.1} parent=15 // pred_region
          %s1379 = smul.u32 8, %s60
          %p1380 = scmp.lt.s32.totalorder %s59, 1
          %s1381 = scalar_select %p1380, %s59, 1
          %p1382 = scmp.lt.s32.totalorder %s1379, 7
          %s1383 = scalar_select %p1382, %s1379, 7
          %s1384 = smul.addr %s1381, 8
          %s1385 = sadd.s32 %s1383, %s1384
          %s1386 = smul.addr %s1385, 8
          %s1387 = scalar_lea.vmem %s18, %s1386
          %s1388 = smul.u32 8, %s60
        $region84: #{tpu_custom_call.1} parent=15 // pred_fallthru
          _
      $region16: #{tpu_custom_call.1} parent=5 // pred_fallthru
        _
      %p1389 = scmp.le.s32.totalorder 1, %s52
      %p1390 = scmp.lt.s32.totalorder %s52, 3
      %p1391 = pnand %p1389, %p1390
      %p1392 = pneg %p1391
      // Predicated region
      $region85: #{tpu_custom_call.1} parent=5 // pred_check
        _
      $region86: #{tpu_custom_call.1} parent=5 // pred_check_branch
        %1394 = sbr.rel (%p1391) target = $region88
      $region87: #{tpu_custom_call.1} parent=5 // pred_region
        %s1395 = ssub.s32 %s52, 1
        %s1396 = sand.u32 %s289, 1
        %s1397 = scalar_lea.sflag [#allocation6], %s1396
        %s1398 = sand.u32 %s289, 1
        %s1399 = scalar_lea.vmem [#allocation5], %s1398
        // Predicated region
        $region89: #{tpu_custom_call.1} parent=87 // pred_check
          %p1400 = pneg %p302
        $region90: #{tpu_custom_call.1} parent=87 // pred_check_branch
          %1402 = sbr.rel (%p1400) target = $region92
        $region91: #{tpu_custom_call.1} parent=87 // pred_region
          %1403 = dma.done %s1397, 16
        $region92: #{tpu_custom_call.1} parent=87 // pred_fallthru
          _
        %s1404 = sand.u32 %s57, 1
        %s1405 = scalar_lea.sflag [#allocation9], %s1404
        %s1406 = sand.u32 %s337, 1
        %s1407 = scalar_lea.vmem [#allocation8], %s1406
        // Predicated region
        $region93: #{tpu_custom_call.1} parent=87 // pred_check
          %p1408 = pneg %p350
        $region94: #{tpu_custom_call.1} parent=87 // pred_check_branch
          %1410 = sbr.rel (%p1408) target = $region96
        $region95: #{tpu_custom_call.1} parent=87 // pred_region
          %1411 = dma.done %s1405, 16
        $region96: #{tpu_custom_call.1} parent=87 // pred_fallthru
          _
        %s1412 = sand.u32 %s57, 1
        %s1413 = scalar_lea.sflag [#allocation9], %s1412
        %s1414 = sand.u32 %s385, 1
        %s1415 = scalar_lea.vmem [#allocation10], %s1414
        // Predicated region
        $region97: #{tpu_custom_call.1} parent=87 // pred_check
          %p1416 = pneg %p398
        $region98: #{tpu_custom_call.1} parent=87 // pred_check_branch
          %1418 = sbr.rel (%p1416) target = $region100
        $region99: #{tpu_custom_call.1} parent=87 // pred_region
          %1419 = dma.done %s1413, 16
        $region100: #{tpu_custom_call.1} parent=87 // pred_fallthru
          _
        %s1420 = sand.u32 %s57, 1
        %s1421 = scalar_lea.sflag [#allocation12], %s1420
        %s1422 = sand.u32 %s433, 1
        %s1423 = scalar_lea.vmem [#allocation11], %s1422
        // Predicated region
        $region101: #{tpu_custom_call.1} parent=87 // pred_check
          %p1424 = pneg %p446
        $region102: #{tpu_custom_call.1} parent=87 // pred_check_branch
          %1426 = sbr.rel (%p1424) target = $region104
        $region103: #{tpu_custom_call.1} parent=87 // pred_region
          %1427 = dma.done %s1421, 16
        $region104: #{tpu_custom_call.1} parent=87 // pred_fallthru
          _
        %s1428 = sand.u32 %s57, 1
        %s1429 = scalar_lea.sflag [#allocation12], %s1428
        %s1430 = sand.u32 %s527, 1
        %s1431 = smul.addr %s1430, 8
        %s1432 = scalar_lea.vmem [#allocation13], %s1431
        // Predicated region
        $region105: #{tpu_custom_call.1} parent=87 // pred_check
          %p1433 = pneg %p540
        $region106: #{tpu_custom_call.1} parent=87 // pred_check_branch
          %1435 = sbr.rel (%p1433) target = $region108
        $region107: #{tpu_custom_call.1} parent=87 // pred_region
          %1436 = dma.done %s1429, 128
        $region108: #{tpu_custom_call.1} parent=87 // pred_fallthru
          _
        %s1437 = sand.u32 %s57, 1
        %s1438 = scalar_lea.sflag [#allocation15], %s1437
        %s1439 = sand.u32 %s575, 1
        %s1440 = smul.addr %s1439, 8
        %s1441 = scalar_lea.vmem [#allocation14], %s1440
        // Predicated region
        $region109: #{tpu_custom_call.1} parent=87 // pred_check
          %p1442 = pneg %p588
        $region110: #{tpu_custom_call.1} parent=87 // pred_check_branch
          %1444 = sbr.rel (%p1442) target = $region112
        $region111: #{tpu_custom_call.1} parent=87 // pred_region
          %1445 = dma.done %s1438, 128
        $region112: #{tpu_custom_call.1} parent=87 // pred_fallthru
          _
        %s1446 = sand.u32 %s57, 1
        %s1447 = scalar_lea.sflag [#allocation15], %s1446
        %s1448 = sand.u32 %s623, 1
        %s1449 = smul.addr %s1448, 8
        %s1450 = scalar_lea.vmem [#allocation16], %s1449
        // Predicated region
        $region113: #{tpu_custom_call.1} parent=87 // pred_check
          %p1451 = pneg %p636
        $region114: #{tpu_custom_call.1} parent=87 // pred_check_branch
          %1453 = sbr.rel (%p1451) target = $region116
        $region115: #{tpu_custom_call.1} parent=87 // pred_region
          %1454 = dma.done %s1447, 128
        $region116: #{tpu_custom_call.1} parent=87 // pred_fallthru
          _
        %s1455 = sand.u32 %s57, 1
        %s1456 = scalar_lea.sflag [#allocation18], %s1455
        %s1457 = sand.u32 %s671, 1
        %s1458 = smul.addr %s1457, 8
        %s1459 = scalar_lea.vmem [#allocation17], %s1458
        // Predicated region
        $region117: #{tpu_custom_call.1} parent=87 // pred_check
          %p1460 = pneg %p684
        $region118: #{tpu_custom_call.1} parent=87 // pred_check_branch
          %1462 = sbr.rel (%p1460) target = $region120
        $region119: #{tpu_custom_call.1} parent=87 // pred_region
          %1463 = dma.done %s1456, 128
        $region120: #{tpu_custom_call.1} parent=87 // pred_fallthru
          _
        %s1464 = sand.u32 %s57, 1
        %s1465 = scalar_lea.sflag [#allocation18], %s1464
        %s1466 = sand.u32 %s719, 1
        %s1467 = smul.addr %s1466, 8
        %s1468 = scalar_lea.vmem [#allocation19], %s1467
        // Predicated region
        $region121: #{tpu_custom_call.1} parent=87 // pred_check
          %p1469 = pneg %p732
        $region122: #{tpu_custom_call.1} parent=87 // pred_check_branch
          %1471 = sbr.rel (%p1469) target = $region124
        $region123: #{tpu_custom_call.1} parent=87 // pred_region
          %1472 = dma.done %s1465, 128
        $region124: #{tpu_custom_call.1} parent=87 // pred_fallthru
          _
        %s1473 = sand.u32 %s57, 1
        %s1474 = scalar_lea.sflag [#allocation21], %s1473
        %s1475 = sand.u32 %s767, 1
        %s1476 = smul.addr %s1475, 8
        %s1477 = scalar_lea.vmem [#allocation20], %s1476
        // Predicated region
        $region125: #{tpu_custom_call.1} parent=87 // pred_check
          %p1478 = pneg %p780
        $region126: #{tpu_custom_call.1} parent=87 // pred_check_branch
          %1480 = sbr.rel (%p1478) target = $region128
        $region127: #{tpu_custom_call.1} parent=87 // pred_region
          %1481 = dma.done %s1474, 128
        $region128: #{tpu_custom_call.1} parent=87 // pred_fallthru
          _
        %s1482 = sand.u32 %s57, 1
        %s1483 = scalar_lea.sflag [#allocation21], %s1482
        %s1484 = sand.u32 %s815, 1
        %s1485 = smul.addr %s1484, 8
        %s1486 = scalar_lea.vmem [#allocation22], %s1485
        // Predicated region
        $region129: #{tpu_custom_call.1} parent=87 // pred_check
          %p1487 = pneg %p828
        $region130: #{tpu_custom_call.1} parent=87 // pred_check_branch
          %1489 = sbr.rel (%p1487) target = $region132
        $region131: #{tpu_custom_call.1} parent=87 // pred_region
          %1490 = dma.done %s1483, 128
        $region132: #{tpu_custom_call.1} parent=87 // pred_fallthru
          _
        %s1491 = smul.u32 %s62, 8
        %s1492 = sshra.s32 %s1491, 7
        %s1493 = sand.u32 %s1491, 127
        %s1494 = sadd.s32 %s1492, %s61
        %s1495 = smul.u32 %s1494, 128
        %s1496 = sshra.s32 %s1491, 7
        %s1497 = sand.u32 %s1491, 127
        %s1498 = sadd.s32 %s1495, %s1497
        %s1499 = sld [smem:[#allocation4 + %s1498]]
        %p1500 = scmp.lt.s32.totalorder %s61, 1
        %s1501 = scalar_select %p1500, %s61, 1
        %p1502 = scmp.lt.s32.totalorder %s1499, 7
        %s1503 = scalar_select %p1502, %s1499, 7
        %s1504 = smul.addr %s1501, 8
        %s1505 = sadd.s32 %s1503, %s1504
        %s1506 = scalar_lea.vmem %s2, %s1505
        %p1507 = pneg %p110
        %p1508 = pneg %p107
        %s1509 = smul.u32 %s62, 8
        %s1510 = sadd.s32 %s1509, 1
        %s1511 = sshra.s32 %s1510, 7
        %s1512 = sand.u32 %s1510, 127
        %s1513 = sadd.s32 %s1511, %s61
        %s1514 = smul.u32 %s1513, 128
        %s1515 = sshra.s32 %s1510, 7
        %s1516 = sand.u32 %s1510, 127
        %s1517 = sadd.s32 %s1514, %s1516
        %s1518 = sld [smem:[#allocation4 + %s1517]]
        %p1519 = scmp.lt.s32.totalorder %s61, 1
        %s1520 = scalar_select %p1519, %s61, 1
        %p1521 = scmp.lt.s32.totalorder %s1518, 7
        %s1522 = scalar_select %p1521, %s1518, 7
        %s1523 = smul.addr %s1520, 8
        %s1524 = sadd.s32 %s1522, %s1523
        %s1525 = scalar_lea.vmem %s3, %s1524
        %p1526 = pneg %p158
        %p1527 = pneg %p155
        %s1528 = smul.u32 %s62, 8
        %s1529 = sadd.s32 %s1528, 2
        %s1530 = sshra.s32 %s1529, 7
        %s1531 = sand.u32 %s1529, 127
        %s1532 = sadd.s32 %s1530, %s61
        %s1533 = smul.u32 %s1532, 128
        %s1534 = sshra.s32 %s1529, 7
        %s1535 = sand.u32 %s1529, 127
        %s1536 = sadd.s32 %s1533, %s1535
        %s1537 = sld [smem:[#allocation4 + %s1536]]
        %p1538 = scmp.lt.s32.totalorder %s61, 1
        %s1539 = scalar_select %p1538, %s61, 1
        %p1540 = scmp.lt.s32.totalorder %s1537, 7
        %s1541 = scalar_select %p1540, %s1537, 7
        %s1542 = smul.addr %s1539, 8
        %s1543 = sadd.s32 %s1541, %s1542
        %s1544 = scalar_lea.vmem %s4, %s1543
        %p1545 = pneg %p206
        %p1546 = pneg %p203
        %s1547 = smul.u32 %s62, 8
        %s1548 = sadd.s32 %s1547, 3
        %s1549 = sshra.s32 %s1548, 7
        %s1550 = sand.u32 %s1548, 127
        %s1551 = sadd.s32 %s1549, %s61
        %s1552 = smul.u32 %s1551, 128
        %s1553 = sshra.s32 %s1548, 7
        %s1554 = sand.u32 %s1548, 127
        %s1555 = sadd.s32 %s1552, %s1554
        %s1556 = sld [smem:[#allocation4 + %s1555]]
        %p1557 = scmp.lt.s32.totalorder %s61, 1
        %s1558 = scalar_select %p1557, %s61, 1
        %p1559 = scmp.lt.s32.totalorder %s1556, 7
        %s1560 = scalar_select %p1559, %s1556, 7
        %s1561 = smul.addr %s1558, 8
        %s1562 = sadd.s32 %s1560, %s1561
        %s1563 = scalar_lea.vmem %s5, %s1562
        %p1564 = pneg %p254
        %p1565 = pneg %p251
        %s1566 = sand.u32 %s289, 1
        %s1567 = scalar_lea.sflag [#allocation6], %s1566
        %s1568 = sand.u32 %s289, 1
        %s1569 = scalar_lea.vmem [#allocation5], %s1568
        %p1570 = pneg %p302
        %p1571 = pneg %p299
        %s1572 = sand.u32 %s57, 1
        %s1573 = scalar_lea.sflag [#allocation9], %s1572
        %s1574 = sand.u32 %s337, 1
        %s1575 = scalar_lea.vmem [#allocation8], %s1574
        %p1576 = pneg %p350
        %p1577 = pneg %p347
        %s1578 = sand.u32 %s57, 1
        %s1579 = scalar_lea.sflag [#allocation9], %s1578
        %s1580 = sand.u32 %s385, 1
        %s1581 = scalar_lea.vmem [#allocation10], %s1580
        %p1582 = pneg %p398
        %p1583 = pneg %p395
        %s1584 = sand.u32 %s57, 1
        %s1585 = scalar_lea.sflag [#allocation12], %s1584
        %s1586 = sand.u32 %s433, 1
        %s1587 = scalar_lea.vmem [#allocation11], %s1586
        %p1588 = pneg %p446
        %p1589 = pneg %p443
        %s1590 = smul.u32 %s62, 8
        %s1591 = sshra.s32 %s1590, 7
        %s1592 = sand.u32 %s1590, 127
        %s1593 = sadd.s32 %s1591, %s61
        %s1594 = smul.u32 %s1593, 128
        %s1595 = sshra.s32 %s1590, 7
        %s1596 = sand.u32 %s1590, 127
        %s1597 = sadd.s32 %s1594, %s1596
        %s1598 = sld [smem:[#allocation3 + %s1597]]
        %p1599 = scmp.lt.s32.totalorder %s61, 1
        %s1600 = scalar_select %p1599, %s61, 1
        %p1601 = scmp.lt.s32.totalorder %s1598, 5
        %s1602 = scalar_select %p1601, %s1598, 5
        %s1603 = smul.addr %s1600, 6
        %s1604 = sadd.s32 %s1602, %s1603
        %s1605 = smul.addr %s1604, 8
        %s1606 = scalar_lea.vmem %s10, %s1605
        %p1607 = pneg %p492
        %p1608 = pneg %p489
        %s1609 = sand.u32 %s57, 1
        %s1610 = scalar_lea.sflag [#allocation12], %s1609
        %s1611 = sand.u32 %s527, 1
        %s1612 = smul.addr %s1611, 8
        %s1613 = scalar_lea.vmem [#allocation13], %s1612
        %p1614 = pneg %p540
        %p1615 = pneg %p537
        %s1616 = sand.u32 %s57, 1
        %s1617 = scalar_lea.sflag [#allocation15], %s1616
        %s1618 = sand.u32 %s575, 1
        %s1619 = smul.addr %s1618, 8
        %s1620 = scalar_lea.vmem [#allocation14], %s1619
        %p1621 = pneg %p588
        %p1622 = pneg %p585
        %s1623 = sand.u32 %s57, 1
        %s1624 = scalar_lea.sflag [#allocation15], %s1623
        %s1625 = sand.u32 %s623, 1
        %s1626 = smul.addr %s1625, 8
        %s1627 = scalar_lea.vmem [#allocation16], %s1626
        %p1628 = pneg %p636
        %p1629 = pneg %p633
        %s1630 = sand.u32 %s57, 1
        %s1631 = scalar_lea.sflag [#allocation18], %s1630
        %s1632 = sand.u32 %s671, 1
        %s1633 = smul.addr %s1632, 8
        %s1634 = scalar_lea.vmem [#allocation17], %s1633
        %p1635 = pneg %p684
        %p1636 = pneg %p681
        %s1637 = sand.u32 %s57, 1
        %s1638 = scalar_lea.sflag [#allocation18], %s1637
        %s1639 = sand.u32 %s719, 1
        %s1640 = smul.addr %s1639, 8
        %s1641 = scalar_lea.vmem [#allocation19], %s1640
        %p1642 = pneg %p732
        %p1643 = pneg %p729
        %s1644 = sand.u32 %s57, 1
        %s1645 = scalar_lea.sflag [#allocation21], %s1644
        %s1646 = sand.u32 %s767, 1
        %s1647 = smul.addr %s1646, 8
        %s1648 = scalar_lea.vmem [#allocation20], %s1647
        %p1649 = pneg %p780
        %p1650 = pneg %p777
        %s1651 = sand.u32 %s57, 1
        %s1652 = scalar_lea.sflag [#allocation21], %s1651
        %s1653 = sand.u32 %s815, 1
        %s1654 = smul.addr %s1653, 8
        %s1655 = scalar_lea.vmem [#allocation22], %s1654
        %p1656 = pneg %p828
        %p1657 = pneg %p825
        %s1658 = smul.u32 8, %s62
        %p1659 = scmp.lt.s32.totalorder %s61, 1
        %s1660 = scalar_select %p1659, %s61, 1
        %p1661 = scmp.lt.s32.totalorder %s1658, 7
        %s1662 = scalar_select %p1661, %s1658, 7
        %s1663 = smul.addr %s1660, 8
        %s1664 = sadd.s32 %s1662, %s1663
        %s1665 = smul.addr %s1664, 8
        %s1666 = scalar_lea.vmem %s18, %s1665
        %p1667 = pneg %p856
        %p1668 = pneg %p853
        %p1669 = pneg %p884
        %p1670 = pneg %p881
        %s1671 = sand.u32 %s871, 1
        %s1672 = scalar_lea.sflag [#allocation7], %s1671
        %s1673 = sand.u32 %s871, 1
        %s1674 = smul.addr %s1673, 64
        %s1675 = scalar_lea.vmem [#allocation23], %s1674
        %s1676 = smul.u32 %s62, 8
        %s1677 = sshra.s32 %s1676, 7
        %s1678 = sand.u32 %s1676, 127
        %s1679 = sadd.s32 %s1677, %s61
        %s1680 = smul.u32 %s1679, 128
        %s1681 = sshra.s32 %s1676, 7
        %s1682 = sand.u32 %s1676, 127
        %s1683 = sadd.s32 %s1680, %s1682
        %s1684 = sld [smem:[#allocation4 + %s1683]]
        %p1685 = scmp.lt.s32.totalorder %s61, 1
        %s1686 = scalar_select %p1685, %s61, 1
        %p1687 = scmp.lt.s32.totalorder %s1684, 7
        %s1688 = scalar_select %p1687, %s1684, 7
        %s1689 = smul.addr %s1686, 8
        %s1690 = sadd.s32 %s1688, %s1689
        %s1691 = scalar_lea.vmem %s2, %s1690
        %s1692 = smul.u32 %s62, 8
        %s1693 = sshra.s32 %s1692, 7
        %s1694 = sand.u32 %s1692, 127
        %s1695 = sadd.s32 %s1693, %s61
        %s1696 = smul.u32 %s1695, 128
        %s1697 = sshra.s32 %s1692, 7
        %s1698 = sand.u32 %s1692, 127
        %s1699 = sadd.s32 %s1696, %s1698
        %s1700 = sld [smem:[#allocation4 + %s1699]]
        %s1701 = smul.u32 %s62, 8
        %s1702 = sadd.s32 %s1701, 1
        %s1703 = sshra.s32 %s1702, 7
        %s1704 = sand.u32 %s1702, 127
        %s1705 = sadd.s32 %s1703, %s61
        %s1706 = smul.u32 %s1705, 128
        %s1707 = sshra.s32 %s1702, 7
        %s1708 = sand.u32 %s1702, 127
        %s1709 = sadd.s32 %s1706, %s1708
        %s1710 = sld [smem:[#allocation4 + %s1709]]
        %p1711 = scmp.lt.s32.totalorder %s61, 1
        %s1712 = scalar_select %p1711, %s61, 1
        %p1713 = scmp.lt.s32.totalorder %s1710, 7
        %s1714 = scalar_select %p1713, %s1710, 7
        %s1715 = smul.addr %s1712, 8
        %s1716 = sadd.s32 %s1714, %s1715
        %s1717 = scalar_lea.vmem %s3, %s1716
        %s1718 = smul.u32 %s62, 8
        %s1719 = sadd.s32 %s1718, 1
        %s1720 = sshra.s32 %s1719, 7
        %s1721 = sand.u32 %s1719, 127
        %s1722 = sadd.s32 %s1720, %s61
        %s1723 = smul.u32 %s1722, 128
        %s1724 = sshra.s32 %s1719, 7
        %s1725 = sand.u32 %s1719, 127
        %s1726 = sadd.s32 %s1723, %s1725
        %s1727 = sld [smem:[#allocation4 + %s1726]]
        %s1728 = smul.u32 %s62, 8
        %s1729 = sadd.s32 %s1728, 2
        %s1730 = sshra.s32 %s1729, 7
        %s1731 = sand.u32 %s1729, 127
        %s1732 = sadd.s32 %s1730, %s61
        %s1733 = smul.u32 %s1732, 128
        %s1734 = sshra.s32 %s1729, 7
        %s1735 = sand.u32 %s1729, 127
        %s1736 = sadd.s32 %s1733, %s1735
        %s1737 = sld [smem:[#allocation4 + %s1736]]
        %p1738 = scmp.lt.s32.totalorder %s61, 1
        %s1739 = scalar_select %p1738, %s61, 1
        %p1740 = scmp.lt.s32.totalorder %s1737, 7
        %s1741 = scalar_select %p1740, %s1737, 7
        %s1742 = smul.addr %s1739, 8
        %s1743 = sadd.s32 %s1741, %s1742
        %s1744 = scalar_lea.vmem %s4, %s1743
        %s1745 = smul.u32 %s62, 8
        %s1746 = sadd.s32 %s1745, 2
        %s1747 = sshra.s32 %s1746, 7
        %s1748 = sand.u32 %s1746, 127
        %s1749 = sadd.s32 %s1747, %s61
        %s1750 = smul.u32 %s1749, 128
        %s1751 = sshra.s32 %s1746, 7
        %s1752 = sand.u32 %s1746, 127
        %s1753 = sadd.s32 %s1750, %s1752
        %s1754 = sld [smem:[#allocation4 + %s1753]]
        %s1755 = smul.u32 %s62, 8
        %s1756 = sadd.s32 %s1755, 3
        %s1757 = sshra.s32 %s1756, 7
        %s1758 = sand.u32 %s1756, 127
        %s1759 = sadd.s32 %s1757, %s61
        %s1760 = smul.u32 %s1759, 128
        %s1761 = sshra.s32 %s1756, 7
        %s1762 = sand.u32 %s1756, 127
        %s1763 = sadd.s32 %s1760, %s1762
        %s1764 = sld [smem:[#allocation4 + %s1763]]
        %p1765 = scmp.lt.s32.totalorder %s61, 1
        %s1766 = scalar_select %p1765, %s61, 1
        %p1767 = scmp.lt.s32.totalorder %s1764, 7
        %s1768 = scalar_select %p1767, %s1764, 7
        %s1769 = smul.addr %s1766, 8
        %s1770 = sadd.s32 %s1768, %s1769
        %s1771 = scalar_lea.vmem %s5, %s1770
        %s1772 = smul.u32 %s62, 8
        %s1773 = sadd.s32 %s1772, 3
        %s1774 = sshra.s32 %s1773, 7
        %s1775 = sand.u32 %s1773, 127
        %s1776 = sadd.s32 %s1774, %s61
        %s1777 = smul.u32 %s1776, 128
        %s1778 = sshra.s32 %s1773, 7
        %s1779 = sand.u32 %s1773, 127
        %s1780 = sadd.s32 %s1777, %s1779
        %s1781 = sld [smem:[#allocation4 + %s1780]]
        %s1782 = smul.u32 %s62, 8
        %s1783 = sadd.s32 %s1782, 4
        %s1784 = sshra.s32 %s1783, 7
        %s1785 = sand.u32 %s1783, 127
        %s1786 = sadd.s32 %s1784, %s61
        %s1787 = smul.u32 %s1786, 128
        %s1788 = sshra.s32 %s1783, 7
        %s1789 = sand.u32 %s1783, 127
        %s1790 = sadd.s32 %s1787, %s1789
        %s1791 = sld [smem:[#allocation4 + %s1790]]
        %s1792 = smul.u32 %s62, 8
        %s1793 = sadd.s32 %s1792, 5
        %s1794 = sshra.s32 %s1793, 7
        %s1795 = sand.u32 %s1793, 127
        %s1796 = sadd.s32 %s1794, %s61
        %s1797 = smul.u32 %s1796, 128
        %s1798 = sshra.s32 %s1793, 7
        %s1799 = sand.u32 %s1793, 127
        %s1800 = sadd.s32 %s1797, %s1799
        %s1801 = sld [smem:[#allocation4 + %s1800]]
        %s1802 = smul.u32 %s62, 8
        %s1803 = sadd.s32 %s1802, 6
        %s1804 = sshra.s32 %s1803, 7
        %s1805 = sand.u32 %s1803, 127
        %s1806 = sadd.s32 %s1804, %s61
        %s1807 = smul.u32 %s1806, 128
        %s1808 = sshra.s32 %s1803, 7
        %s1809 = sand.u32 %s1803, 127
        %s1810 = sadd.s32 %s1807, %s1809
        %s1811 = sld [smem:[#allocation4 + %s1810]]
        %s1812 = smul.u32 %s62, 8
        %s1813 = sadd.s32 %s1812, 7
        %s1814 = sshra.s32 %s1813, 7
        %s1815 = sand.u32 %s1813, 127
        %s1816 = sadd.s32 %s1814, %s61
        %s1817 = smul.u32 %s1816, 128
        %s1818 = sshra.s32 %s1813, 7
        %s1819 = sand.u32 %s1813, 127
        %s1820 = sadd.s32 %s1817, %s1819
        %s1821 = sld [smem:[#allocation4 + %s1820]]
        %s1822 = smul.u32 %s62, 8
        %s1823 = sshra.s32 %s1822, 7
        %s1824 = sand.u32 %s1822, 127
        %s1825 = sadd.s32 %s1823, %s61
        %s1826 = smul.u32 %s1825, 128
        %s1827 = sshra.s32 %s1822, 7
        %s1828 = sand.u32 %s1822, 127
        %s1829 = sadd.s32 %s1826, %s1828
        %s1830 = sld [smem:[#allocation3 + %s1829]]
        %p1831 = scmp.lt.s32.totalorder %s61, 1
        %s1832 = scalar_select %p1831, %s61, 1
        %p1833 = scmp.lt.s32.totalorder %s1830, 5
        %s1834 = scalar_select %p1833, %s1830, 5
        %s1835 = smul.addr %s1832, 6
        %s1836 = sadd.s32 %s1834, %s1835
        %s1837 = smul.addr %s1836, 8
        %s1838 = scalar_lea.vmem %s10, %s1837
        %s1839 = smul.u32 %s62, 8
        %s1840 = sshra.s32 %s1839, 7
        %s1841 = sand.u32 %s1839, 127
        %s1842 = sadd.s32 %s1840, %s61
        %s1843 = smul.u32 %s1842, 128
        %s1844 = sshra.s32 %s1839, 7
        %s1845 = sand.u32 %s1839, 127
        %s1846 = sadd.s32 %s1843, %s1845
        %s1847 = sld [smem:[#allocation3 + %s1846]]
        %s1848 = smul.u32 %s62, 8
        %s1849 = sadd.s32 %s1848, 1
        %s1850 = sshra.s32 %s1849, 7
        %s1851 = sand.u32 %s1849, 127
        %s1852 = sadd.s32 %s1850, %s61
        %s1853 = smul.u32 %s1852, 128
        %s1854 = sshra.s32 %s1849, 7
        %s1855 = sand.u32 %s1849, 127
        %s1856 = sadd.s32 %s1853, %s1855
        %s1857 = sld [smem:[#allocation3 + %s1856]]
        %s1858 = smul.u32 %s62, 8
        %s1859 = sadd.s32 %s1858, 2
        %s1860 = sshra.s32 %s1859, 7
        %s1861 = sand.u32 %s1859, 127
        %s1862 = sadd.s32 %s1860, %s61
        %s1863 = smul.u32 %s1862, 128
        %s1864 = sshra.s32 %s1859, 7
        %s1865 = sand.u32 %s1859, 127
        %s1866 = sadd.s32 %s1863, %s1865
        %s1867 = sld [smem:[#allocation3 + %s1866]]
        %s1868 = smul.u32 %s62, 8
        %s1869 = sadd.s32 %s1868, 3
        %s1870 = sshra.s32 %s1869, 7
        %s1871 = sand.u32 %s1869, 127
        %s1872 = sadd.s32 %s1870, %s61
        %s1873 = smul.u32 %s1872, 128
        %s1874 = sshra.s32 %s1869, 7
        %s1875 = sand.u32 %s1869, 127
        %s1876 = sadd.s32 %s1873, %s1875
        %s1877 = sld [smem:[#allocation3 + %s1876]]
        %s1878 = smul.u32 %s62, 8
        %s1879 = sadd.s32 %s1878, 4
        %s1880 = sshra.s32 %s1879, 7
        %s1881 = sand.u32 %s1879, 127
        %s1882 = sadd.s32 %s1880, %s61
        %s1883 = smul.u32 %s1882, 128
        %s1884 = sshra.s32 %s1879, 7
        %s1885 = sand.u32 %s1879, 127
        %s1886 = sadd.s32 %s1883, %s1885
        %s1887 = sld [smem:[#allocation3 + %s1886]]
        %s1888 = smul.u32 %s62, 8
        %s1889 = sadd.s32 %s1888, 5
        %s1890 = sshra.s32 %s1889, 7
        %s1891 = sand.u32 %s1889, 127
        %s1892 = sadd.s32 %s1890, %s61
        %s1893 = smul.u32 %s1892, 128
        %s1894 = sshra.s32 %s1889, 7
        %s1895 = sand.u32 %s1889, 127
        %s1896 = sadd.s32 %s1893, %s1895
        %s1897 = sld [smem:[#allocation3 + %s1896]]
        %s1898 = smul.u32 %s62, 8
        %s1899 = sadd.s32 %s1898, 6
        %s1900 = sshra.s32 %s1899, 7
        %s1901 = sand.u32 %s1899, 127
        %s1902 = sadd.s32 %s1900, %s61
        %s1903 = smul.u32 %s1902, 128
        %s1904 = sshra.s32 %s1899, 7
        %s1905 = sand.u32 %s1899, 127
        %s1906 = sadd.s32 %s1903, %s1905
        %s1907 = sld [smem:[#allocation3 + %s1906]]
        %s1908 = smul.u32 %s62, 8
        %s1909 = sadd.s32 %s1908, 7
        %s1910 = sshra.s32 %s1909, 7
        %s1911 = sand.u32 %s1909, 127
        %s1912 = sadd.s32 %s1910, %s61
        %s1913 = smul.u32 %s1912, 128
        %s1914 = sshra.s32 %s1909, 7
        %s1915 = sand.u32 %s1909, 127
        %s1916 = sadd.s32 %s1913, %s1915
        %s1917 = sld [smem:[#allocation3 + %s1916]]
        %s1918 = smul.u32 8, %s62
        %p1919 = scmp.lt.s32.totalorder %s61, 1
        %s1920 = scalar_select %p1919, %s61, 1
        %p1921 = scmp.lt.s32.totalorder %s1918, 7
        %s1922 = scalar_select %p1921, %s1918, 7
        %s1923 = smul.addr %s1920, 8
        %s1924 = sadd.s32 %s1922, %s1923
        %s1925 = smul.addr %s1924, 8
        %s1926 = scalar_lea.vmem %s18, %s1925
        %s1927 = smul.u32 8, %s62
        %s1928 = smul.u32 8, %s62
        %v1929 = vld [vmem:[%s1691] sm:$0x1]
        %v1930 = vld [vmem:[%s1838] sm:$0xff]
        %v1932 = vlaneseq
        %v1933 = vshrl.u32 %v1932, 7
        %v1934 = vsub.s32 0, %v1933
        %v1935 = vrot.slane %v1929, %v1934
        %v1937 = vsub.f32 %v1935, %v1930
        %v1938 = vld [vmem:[%s1926] sm:$0xff]
        %1940 = vset.pattern.permute.xlu0 0
        %1941 = vperm.xlu0 %1940, %v1938
        %v1942 = vpop.permute.xlu0 %1941
        %v1944 = vmul.f32 %v1937, %v1942
        %1945 = vst [vmem:[%s1675] sm:$0xff] %v1944
        %v1946 = vld [vmem:[%s1717] sm:$0x1]
        %v1947 = vld [vmem:[%s1432] sm:$0xff]
        %v1949 = vlaneseq
        %v1950 = vshrl.u32 %v1949, 7
        %v1951 = vsub.s32 0, %v1950
        %v1952 = vrot.slane %v1946, %v1951
        %v1954 = vsub.f32 %v1952, %v1947
        %s1955 = scalar_lea.vmem %s1926, 8
        %v1956 = vld [vmem:[%s1955] sm:$0xff]
        %1958 = vset.pattern.permute.xlu0 0
        %1959 = vperm.xlu0 %1958, %v1956
        %v1960 = vpop.permute.xlu0 %1959
        %v1962 = vmul.f32 %v1954, %v1960
        %s1963 = scalar_lea.vmem %s1675, 8 [#allocation23]
        %1964 = vst [vmem:[%s1963] sm:$0xff] %v1962
        %v1965 = vld [vmem:[%s1744] sm:$0x1]
        %v1966 = vld [vmem:[%s1441] sm:$0xff]
        %v1968 = vlaneseq
        %v1969 = vshrl.u32 %v1968, 7
        %v1970 = vsub.s32 0, %v1969
        %v1971 = vrot.slane %v1965, %v1970
        %v1973 = vsub.f32 %v1971, %v1966
        %s1974 = scalar_lea.vmem %s1926, 16
        %v1975 = vld [vmem:[%s1974] sm:$0xff]
        %1977 = vset.pattern.permute.xlu0 0
        %1978 = vperm.xlu0 %1977, %v1975
        %v1979 = vpop.permute.xlu0 %1978
        %v1981 = vmul.f32 %v1973, %v1979
        %s1982 = scalar_lea.vmem %s1675, 16 [#allocation23]
        %1983 = vst [vmem:[%s1982] sm:$0xff] %v1981
        %v1984 = vld [vmem:[%s1771] sm:$0x1]
        %v1985 = vld [vmem:[%s1450] sm:$0xff]
        %v1987 = vlaneseq
        %v1988 = vshrl.u32 %v1987, 7
        %v1989 = vsub.s32 0, %v1988
        %v1990 = vrot.slane %v1984, %v1989
        %v1992 = vsub.f32 %v1990, %v1985
        %s1993 = scalar_lea.vmem %s1926, 24
        %v1994 = vld [vmem:[%s1993] sm:$0xff]
        %1996 = vset.pattern.permute.xlu0 0
        %1997 = vperm.xlu0 %1996, %v1994
        %v1998 = vpop.permute.xlu0 %1997
        %v2000 = vmul.f32 %v1992, %v1998
        %s2001 = scalar_lea.vmem %s1675, 24 [#allocation23]
        %2002 = vst [vmem:[%s2001] sm:$0xff] %v2000
        %v2003 = vld [vmem:[%s1399] sm:$0x1]
        %v2004 = vld [vmem:[%s1459] sm:$0xff]
        %v2006 = vlaneseq
        %v2007 = vshrl.u32 %v2006, 7
        %v2008 = vsub.s32 0, %v2007
        %v2009 = vrot.slane %v2003, %v2008
        %v2011 = vsub.f32 %v2009, %v2004
        %s2012 = scalar_lea.vmem %s1926, 32
        %v2013 = vld [vmem:[%s2012] sm:$0xff]
        %2015 = vset.pattern.permute.xlu0 0
        %2016 = vperm.xlu0 %2015, %v2013
        %v2017 = vpop.permute.xlu0 %2016
        %v2019 = vmul.f32 %v2011, %v2017
        %s2020 = scalar_lea.vmem %s1675, 32 [#allocation23]
        %2021 = vst [vmem:[%s2020] sm:$0xff] %v2019
        %v2022 = vld [vmem:[%s1407] sm:$0x1]
        %v2023 = vld [vmem:[%s1468] sm:$0xff]
        %v2025 = vlaneseq
        %v2026 = vshrl.u32 %v2025, 7
        %v2027 = vsub.s32 0, %v2026
        %v2028 = vrot.slane %v2022, %v2027
        %v2030 = vsub.f32 %v2028, %v2023
        %s2031 = scalar_lea.vmem %s1926, 40
        %v2032 = vld [vmem:[%s2031] sm:$0xff]
        %2034 = vset.pattern.permute.xlu0 0
        %2035 = vperm.xlu0 %2034, %v2032
        %v2036 = vpop.permute.xlu0 %2035
        %v2038 = vmul.f32 %v2030, %v2036
        %s2039 = scalar_lea.vmem %s1675, 40 [#allocation23]
        %2040 = vst [vmem:[%s2039] sm:$0xff] %v2038
        %v2041 = vld [vmem:[%s1415] sm:$0x1]
        %v2042 = vld [vmem:[%s1477] sm:$0xff]
        %v2044 = vlaneseq
        %v2045 = vshrl.u32 %v2044, 7
        %v2046 = vsub.s32 0, %v2045
        %v2047 = vrot.slane %v2041, %v2046
        %v2049 = vsub.f32 %v2047, %v2042
        %s2050 = scalar_lea.vmem %s1926, 48
        %v2051 = vld [vmem:[%s2050] sm:$0xff]
        %2053 = vset.pattern.permute.xlu0 0
        %2054 = vperm.xlu0 %2053, %v2051
        %v2055 = vpop.permute.xlu0 %2054
        %v2057 = vmul.f32 %v2049, %v2055
        %s2058 = scalar_lea.vmem %s1675, 48 [#allocation23]
        %2059 = vst [vmem:[%s2058] sm:$0xff] %v2057
        %v2060 = vld [vmem:[%s1423] sm:$0x1]
        %v2061 = vld [vmem:[%s1486] sm:$0xff]
        %v2063 = vlaneseq
        %v2064 = vshrl.u32 %v2063, 7
        %v2065 = vsub.s32 0, %v2064
        %v2066 = vrot.slane %v2060, %v2065
        %v2068 = vsub.f32 %v2066, %v2061
        %s2069 = scalar_lea.vmem %s1926, 56
        %v2070 = vld [vmem:[%s2069] sm:$0xff]
        %2072 = vset.pattern.permute.xlu0 0
        %2073 = vperm.xlu0 %2072, %v2070
        %v2074 = vpop.permute.xlu0 %2073
        %v2076 = vmul.f32 %v2068, %v2074
        %s2077 = scalar_lea.vmem %s1675, 56 [#allocation23]
        %2078 = vst [vmem:[%s2077] sm:$0xff] %v2076
        %s2079 = sand.u32 %s871, 1
        %s2080 = scalar_lea.sflag [#allocation7], %s2079
        %s2081 = sand.u32 %s871, 1
        %s2082 = smul.addr %s2081, 64
        %s2083 = scalar_lea.vmem [#allocation23], %s2082
        // Predicated region
        $region133: #{tpu_custom_call.1} parent=87 // pred_check
          %p2084 = pneg %p881
        $region134: #{tpu_custom_call.1} parent=87 // pred_check_branch
          %2086 = sbr.rel (%p2084) target = $region136
        $region135: #{tpu_custom_call.1} parent=87 // pred_region
          %s2087 = smul.u32 8, %s62
          %s2089 = ssub.s32 1024, 1024
          %2090 = vsyncadd %s2080, %s2089
          %s2091 = smul.addr %s61, 8
          %s2092 = sadd.s32 %s2087, %s2091
          %s2093 = smul.addr %s2092, 128
          %s2094 = scalar_lea.hbm %s19, %s2093
          %s2095 = sshll.u32 %s2083, 4
          %s2096 = int_to_ptr.vmem [resolvable:$true] %s2095
          %2101 = dma.vmem_to_hbm [thread:$0]  %s2096, 1024, %s2094, %s2080, 128, 128, 8
        $region136: #{tpu_custom_call.1} parent=87 // pred_fallthru
          _
      $region88: #{tpu_custom_call.1} parent=5 // pred_fallthru
        _
      %p2102 = scmp.le.s32.totalorder 2, %s52
      // Predicated region
      $region137: #{tpu_custom_call.1} parent=5 // pred_check
        %p2103 = pneg %p2102
      $region138: #{tpu_custom_call.1} parent=5 // pred_check_branch
        %2105 = sbr.rel (%p2103) target = $region140
      $region139: #{tpu_custom_call.1} parent=5 // pred_region
        %s2106 = ssub.s32 %s52, 2
        // Predicated region
        $region141: #{tpu_custom_call.1} parent=139 // pred_check
          %p2107 = pneg %p887
        $region142: #{tpu_custom_call.1} parent=139 // pred_check_branch
          %2109 = sbr.rel (%p2107) target = $region144
        $region143: #{tpu_custom_call.1} parent=139 // pred_region
          %s2110 = sand.u32 %s872, 1
          %s2111 = scalar_lea.sflag [#allocation7], %s2110
          %s2112 = sand.u32 %s872, 1
          %s2113 = smul.addr %s2112, 64
          %s2114 = scalar_lea.vmem [#allocation23], %s2113
          %2115 = dma.done %s2111, 1024
        $region144: #{tpu_custom_call.1} parent=139 // pred_fallthru
          _
      $region140: #{tpu_custom_call.1} parent=5 // pred_fallthru
        _
    $region6: #{tpu_custom_call.1} parent=1 // loop_footer
      %s56 = sadd.s32 1, %s52
    $region7: #{tpu_custom_call.1} parent=1 // loop_footer_branch
      %51 = sbr.rel target = $region3
    $region8: #{tpu_custom_call.1} parent=1 // loop_exit
      _
    %2116 = vsyncpa [#allocation6], 1
    %s2117 = scalar_lea.sflag [#allocation6], 1
    %2118 = vsyncpa %s2117, 1
    %2119 = vsyncpa [#allocation9], 1
    %s2120 = scalar_lea.sflag [#allocation9], 1
    %2121 = vsyncpa %s2120, 1
    %2122 = vsyncpa [#allocation12], 1
    %s2123 = scalar_lea.sflag [#allocation12], 1
    %2124 = vsyncpa %s2123, 1
    %2125 = vsyncpa [#allocation15], 1
    %s2126 = scalar_lea.sflag [#allocation15], 1
    %2127 = vsyncpa %s2126, 1
    %2128 = vsyncpa [#allocation18], 1
    %s2129 = scalar_lea.sflag [#allocation18], 1
    %2130 = vsyncpa %s2129, 1
    %2131 = vsyncpa [#allocation21], 1
    %s2132 = scalar_lea.sflag [#allocation21], 1
    %2133 = vsyncpa %s2132, 1
    %2134 = vsyncpa [#allocation7], 1
    %s2135 = scalar_lea.sflag [#allocation7], 1
    %2136 = vsyncpa %s2135, 1

</llo_original>
